<compile_context>
chip_gen: v6e
topology: v6e:2x2x1
jax: 0.10.0
libtpu: 0.0.40
codegen_flags: <defaults>
</compile_context>

<pallas_src>
import functools

import numpy as np
import jax
import jax.numpy as jnp
from jax import lax
from jax.experimental import pallas as pl
from jax.experimental.pallas import tpu as pltpu


# ----------------------------------------------------------------------------
# Pallas kernel: the whole time loop runs inside one kernel invocation.
# ----------------------------------------------------------------------------
def _mtm_kernel(xproj_ref,              # (n_periods, turn, H)  x @ Wx + b, precomputed
                w_in_h_ref,             # (H, H)                hidden part of Other[0][0]
                w_a_ref,                # (2*levels, H, 2H)     fused a-side node weights
                w_b_ref,                # (2*levels*2, H, H)    b-side node weights
                b_node_ref,             # (2*levels*2, 1, H)    node biases
                hsel_ref,               # (n_periods, turn, H)  out: hidden[OUT] per step
                *, n_periods, turn, tree_height):
    levels = tree_height - 1
    H = w_in_h_ref.shape[0]
    n_pairs = 2 * levels

    # Hoist every weight load above the time loop (all indices are static).
    w_in_h = w_in_h_ref[...]
    WA = [w_a_ref[p] for p in range(n_pairs)]             # (H, 2H) each
    WA_R = [wa[:, H:] for wa in WA]                       # right-child a-weight (alias case)
    WB = [w_b_ref[q] for q in range(2 * n_pairs)]         # (H, H)
    BN = [b_node_ref[q] for q in range(2 * n_pairs)]      # (1, H)

    f32 = jnp.float32
    zero = jnp.zeros((1, H), f32)
    # Hidden tree: nodes 1 .. 2^tree_height - 1 (node 0 of the torch list unused).
    init = tuple(zero for _ in range((1 << tree_height) - 1))

    def period(p, carry):
        h = list(carry)                     # h[i] <-> torch hidden[i + 1], kept in vregs
        xp = xproj_ref[p]                   # (turn, H): precomputed input projection rows
        rows = []
        for j in range(turn):               # fully unrolled; schedule is static
            cur = j + 1                     # torch `id` for this step

            # hidden[1] = Other[0][0](cat(x_t, hidden[1]))   (note: NO sigmoid)
            h[0] = xp[j:j + 1, :] + jnp.dot(h[0], w_in_h, preferred_element_type=f32)

            # update(): descend the tree, refreshing both children of `now`.
            now, lo, hi = 1, 1, turn
            for lvl in range(levels):
                ls = now << 1
                rs = ls + 1
                mid = (lo + hi) >> 1
                side = 0 if cur <= mid else 1          # 0 -> Left, 1 -> Right
                pair = side * levels + lvl
                q0 = 2 * pair

                # Fused a-side matmul: hidden[id] hits both child linears at once.
                a_pair = jnp.dot(h[cur - 1], WA[pair], preferred_element_type=f32)

                # hidden[ls] = sigmoid(W0 @ cat(hidden[id], hidden[ls]) + b0)
                new_l = jax.nn.sigmoid(
                    a_pair[:, :H]
                    + jnp.dot(h[ls - 1], WB[q0], preferred_element_type=f32)
                    + BN[q0])
                h[ls - 1] = new_l

                # torch statement order: the rs update sees hidden[id] *after*
                # the ls write.  Only matters when id == ls (statically known).
                if cur == ls:
                    a_r = jnp.dot(h[cur - 1], WA_R[pair], preferred_element_type=f32)
                else:
                    a_r = a_pair[:, H:]

                # hidden[rs] = sigmoid(W1 @ cat(hidden[id], hidden[rs]) + b1)
                new_r = jax.nn.sigmoid(
                    a_r
                    + jnp.dot(h[rs - 1], WB[q0 + 1], preferred_element_type=f32)
                    + BN[q0 + 1])
                h[rs - 1] = new_r

                if side == 0:
                    now, hi = ls, mid
                else:
                    now, lo = rs, mid + 1

            # out for this step uses hidden[OUT] with OUT == id; the output
            # linear + sigmoid are applied as one batched matmul in the wrapper.
            rows.append(h[cur - 1])

        hsel_ref[p] = jnp.concatenate(rows, axis=0)      # one (turn, H) store per period
        return tuple(h)

    lax.fori_loop(0, n_periods, period, init)


def mtm_forward_pallas(x, kernel_params, tree_height):
    """x: (1, N, input_size) float32 -> (1, N, output_size) float32."""
    _, n_steps, _ = x.shape
    hidden = kernel_params['w_in_h'].shape[0]
    levels = tree_height - 1
    turn = 1 << levels
    n_periods = -(-n_steps // turn)
    n_pad = n_periods * turn

    # Batched input projection OUTSIDE the serial kernel (MXU-friendly, off the
    # serial chain; on v7x it can run beside the serial kernel).
    x2d = x[0].astype(jnp.float32)                                    # (N, In)
    xproj = jnp.dot(x2d, kernel_params['w_in_x'],
                    precision=jax.lax.Precision.HIGHEST) + kernel_params['b_in']
    if n_pad != n_steps:
        xproj = jnp.pad(xproj, ((0, n_pad - n_steps), (0, 0)))
    xproj = xproj.reshape(n_periods, turn, hidden)

    vmem = pl.BlockSpec(memory_space=pltpu.MemorySpace.VMEM)
    kernel = functools.partial(_mtm_kernel, n_periods=n_periods, turn=turn,
                               tree_height=tree_height)

    hsel = pl.pallas_call(
        kernel,
        out_shape=jax.ShapeDtypeStruct((n_periods, turn, hidden), jnp.float32),
        in_specs=[vmem] * 5,
        out_specs=vmem,
    )(xproj, kernel_params['w_in_h'], kernel_params['w_a_fused'],
      kernel_params['w_b'], kernel_params['b_node'])

    # Batched output projection + sigmoid, also outside the serial kernel.
    hsel2d = hsel.reshape(n_pad, hidden)[:n_steps]
    out = jax.nn.sigmoid(
        jnp.dot(hsel2d, kernel_params['w_out'],
                precision=jax.lax.Precision.HIGHEST) + kernel_params['b_out'])
    return out[None, :, :]                                            # (1, N, Out)


# ----------------------------------------------------------------------------
# Deterministic parameter init (nn.Linear shapes & uniform(-1/sqrt(fan_in), ..))
# ----------------------------------------------------------------------------
def init_params(key, in_size, hidden, out_size, tree_height):
    levels = tree_height - 1

    def linear(k, fan_in, fan_out):
        kw, kb = jax.random.split(k)
        bound = 1.0 / np.sqrt(fan_in)
        w = jax.random.uniform(kw, (fan_out, fan_in), jnp.float32, -bound, bound)
        b = jax.random.uniform(kb, (fan_out,), jnp.float32, -bound, bound)
        return np.asarray(w), np.asarray(b)        # torch convention (out, in)

    keys = jax.random.split(key, 2 + 4 * levels)
    w_other, b_other = linear(keys[0], in_size + hidden, hidden)
    w_out, b_out = linear(keys[1], hidden, out_size)

    node = {}   # (side, lvl, which) -> (w, b);  side: 0=Left, 1=Right
    kidx = 2
    for side in range(2):
        for lvl in range(levels):
            for which in range(2):
                node[(side, lvl, which)] = linear(keys[kidx], 2 * hidden, hidden)
                kidx += 1

    n_pairs = 2 * levels
    w_node_a = np.zeros((2 * n_pairs, hidden, hidden), np.float32)   # multiplies hidden[id]
    w_node_b = np.zeros((2 * n_pairs, hidden, hidden), np.float32)   # multiplies hidden[child]
    b_node = np.zeros((2 * n_pairs, 1, hidden), np.float32)
    for (side, lvl, which), (w, b) in node.items():
        idx = (side * levels + lvl) * 2 + which
        w_node_a[idx] = w[:, :hidden].T
        w_node_b[idx] = w[:, hidden:].T
        b_node[idx, 0] = b

    # Fused a-side weights: per (side, lvl) pair, [which=0 | which=1] on output dim.
    w_a_fused = np.zeros((n_pairs, hidden, 2 * hidden), np.float32)
    for pair in range(n_pairs):
        w_a_fused[pair, :, :hidden] = w_node_a[2 * pair]
        w_a_fused[pair, :, hidden:] = w_node_a[2 * pair + 1]

    torch_params = {'w_other': w_other, 'b_other': b_other, 'node': node,
                    'w_out_t': w_out, 'b_out_t': b_out}
    kernel_params = {
        'w_in_x': jnp.asarray(w_other[:, :in_size].T),
        'w_in_h': jnp.asarray(w_other[:, in_size:].T),
        'b_in': jnp.asarray(b_other[None, :]),
        'w_a_fused': jnp.asarray(w_a_fused),
        'w_b': jnp.asarray(w_node_b),
        'b_node': jnp.asarray(b_node),
        'w_out': jnp.asarray(w_out.T),
        'b_out': jnp.asarray(b_out[None, :]),
    }
    return torch_params, kernel_params


# ----------------------------------------------------------------------------
# Pure numpy reference (literal transcription of the PyTorch forward).
# ----------------------------------------------------------------------------
def mtm_forward_reference(x, tp, tree_height):
    x = np.asarray(x)
    _, n_steps, _ = x.shape
    hidden = tp['b_other'].shape[0]
    sigmoid = lambda v: 1.0 / (1.0 + np.exp(-v))
    lin = lambda v, w, b: v @ w.T + b

    hid = [np.zeros((1, hidden), np.float32) for _ in range((1 << tree_height) + 1)]
    turn = 1 << (tree_height - 1)
    cur_id = 1
    outs = []
    for t in range(n_steps):
        comb = np.concatenate([x[:, t, :], hid[1]], axis=1)
        hid[1] = lin(comb, tp['w_other'], tp['b_other'])
        now, lo, hi, height = 1, 1, turn, 1
        while height != tree_height:
            l_child, r_child = now << 1, (now << 1) + 1
            mid = (lo + hi) >> 1
            side = 0 if cur_id <= mid else 1
            w0, b0 = tp['node'][(side, height - 1, 0)]
            w1, b1 = tp['node'][(side, height - 1, 1)]
            hid[l_child] = sigmoid(lin(np.concatenate([hid[cur_id], hid[l_child]], 1), w0, b0))
            hid[r_child] = sigmoid(lin(np.concatenate([hid[cur_id], hid[r_child]], 1), w1, b1))
            if side == 0:
                now, hi = l_child, mid
            else:
                now, lo = r_child, mid + 1
            height += 1
        outs.append(sigmoid(lin(hid[cur_id], tp['w_out_t'], tp['b_out_t'])))
        cur_id += 1
        if cur_id > turn:
            cur_id -= turn
    return np.stack(outs, axis=1)   # (1, N, Out)


if __name__ == "__main__":
    INPUT_SIZE, HIDDEN_SIZE, OUTPUT_SIZE = 16, 32, 8
    TREE_HEIGHT = 3       # matches `height = 3` in the original file
    N_STEPS = 10          # small stand-in for N = 300 (exercises the ragged tail)
    BATCH = 1             # the module's hidden states force batch == 1

    key = jax.random.PRNGKey(0)
    k_param, k_x = jax.random.split(key)
    torch_params, kernel_params = init_params(
        k_param, INPUT_SIZE, HIDDEN_SIZE, OUTPUT_SIZE, TREE_HEIGHT)
    x = jax.random.normal(k_x, (BATCH, N_STEPS, INPUT_SIZE), jnp.float32)

    fwd = jax.jit(functools.partial(mtm_forward_pallas, tree_height=TREE_HEIGHT))
    out = fwd(x, kernel_params)
    out = jax.block_until_ready(out)

    ref = mtm_forward_reference(x, torch_params, TREE_HEIGHT)
    assert out.shape == (BATCH, N_STEPS, OUTPUT_SIZE)
    np.testing.assert_allclose(np.asarray(out), ref, rtol=1e-4, atol=1e-4)
    print("KERNEL_OK")
</pallas_src>

<mosaic_0001>
module attributes {stable_mosaic.version = 11 : i64} {
  func.func @_mtm_kernel(%arg0: memref<3x4x32xf32, #tpu.memory_space<vmem>>, %arg1: memref<32x32xf32, #tpu.memory_space<vmem>>, %arg2: memref<4x32x64xf32, #tpu.memory_space<vmem>>, %arg3: memref<8x32x32xf32, #tpu.memory_space<vmem>>, %arg4: memref<8x1x32xf32, #tpu.memory_space<vmem>>, %arg5: memref<3x4x32xf32, #tpu.memory_space<vmem>>) attributes {dimension_semantics = [], scalar_prefetch = 0 : i64, scratch_operands = 0 : i64, tpu.core_type = #tpu.core_type<tc>} {
    %c0 = arith.constant 0 : index
    %c0_0 = arith.constant 0 : index
    %0 = vector.load %arg1[%c0, %c0_0] : memref<32x32xf32, #tpu.memory_space<vmem>>, vector<32x32xf32>
    %c0_1 = arith.constant 0 : index
    %c0_2 = arith.constant 0 : index
    %c0_3 = arith.constant 0 : index
    %1 = vector.load %arg2[%c0_1, %c0_2, %c0_3] : memref<4x32x64xf32, #tpu.memory_space<vmem>>, vector<1x32x64xf32>
    %2 = vector.shape_cast %1 : vector<1x32x64xf32> to vector<32x64xf32>
    %c1 = arith.constant 1 : index
    %c0_4 = arith.constant 0 : index
    %c0_5 = arith.constant 0 : index
    %3 = vector.load %arg2[%c1, %c0_4, %c0_5] : memref<4x32x64xf32, #tpu.memory_space<vmem>>, vector<1x32x64xf32>
    %4 = vector.shape_cast %3 : vector<1x32x64xf32> to vector<32x64xf32>
    %c2 = arith.constant 2 : index
    %c0_6 = arith.constant 0 : index
    %c0_7 = arith.constant 0 : index
    %5 = vector.load %arg2[%c2, %c0_6, %c0_7] : memref<4x32x64xf32, #tpu.memory_space<vmem>>, vector<1x32x64xf32>
    %6 = vector.shape_cast %5 : vector<1x32x64xf32> to vector<32x64xf32>
    %c3 = arith.constant 3 : index
    %c0_8 = arith.constant 0 : index
    %c0_9 = arith.constant 0 : index
    %7 = vector.load %arg2[%c3, %c0_8, %c0_9] : memref<4x32x64xf32, #tpu.memory_space<vmem>>, vector<1x32x64xf32>
    %8 = vector.shape_cast %7 : vector<1x32x64xf32> to vector<32x64xf32>
    %9 = vector.extract_strided_slice %2 {offsets = [0, 32], sizes = [32, 32], strides = [1, 1]} : vector<32x64xf32> to vector<32x32xf32>
    %c0_10 = arith.constant 0 : index
    %c0_11 = arith.constant 0 : index
    %c0_12 = arith.constant 0 : index
    %10 = vector.load %arg3[%c0_10, %c0_11, %c0_12] : memref<8x32x32xf32, #tpu.memory_space<vmem>>, vector<1x32x32xf32>
    %11 = vector.shape_cast %10 : vector<1x32x32xf32> to vector<32x32xf32>
    %c1_13 = arith.constant 1 : index
    %c0_14 = arith.constant 0 : index
    %c0_15 = arith.constant 0 : index
    %12 = vector.load %arg3[%c1_13, %c0_14, %c0_15] : memref<8x32x32xf32, #tpu.memory_space<vmem>>, vector<1x32x32xf32>
    %13 = vector.shape_cast %12 : vector<1x32x32xf32> to vector<32x32xf32>
    %c2_16 = arith.constant 2 : index
    %c0_17 = arith.constant 0 : index
    %c0_18 = arith.constant 0 : index
    %14 = vector.load %arg3[%c2_16, %c0_17, %c0_18] : memref<8x32x32xf32, #tpu.memory_space<vmem>>, vector<1x32x32xf32>
    %15 = vector.shape_cast %14 : vector<1x32x32xf32> to vector<32x32xf32>
    %c4 = arith.constant 4 : index
    %c0_19 = arith.constant 0 : index
    %c0_20 = arith.constant 0 : index
    %16 = vector.load %arg3[%c4, %c0_19, %c0_20] : memref<8x32x32xf32, #tpu.memory_space<vmem>>, vector<1x32x32xf32>
    %17 = vector.shape_cast %16 : vector<1x32x32xf32> to vector<32x32xf32>
    %c5 = arith.constant 5 : index
    %c0_21 = arith.constant 0 : index
    %c0_22 = arith.constant 0 : index
    %18 = vector.load %arg3[%c5, %c0_21, %c0_22] : memref<8x32x32xf32, #tpu.memory_space<vmem>>, vector<1x32x32xf32>
    %19 = vector.shape_cast %18 : vector<1x32x32xf32> to vector<32x32xf32>
    %c6 = arith.constant 6 : index
    %c0_23 = arith.constant 0 : index
    %c0_24 = arith.constant 0 : index
    %20 = vector.load %arg3[%c6, %c0_23, %c0_24] : memref<8x32x32xf32, #tpu.memory_space<vmem>>, vector<1x32x32xf32>
    %21 = vector.shape_cast %20 : vector<1x32x32xf32> to vector<32x32xf32>
    %c0_25 = arith.constant 0 : index
    %c0_26 = arith.constant 0 : index
    %c0_27 = arith.constant 0 : index
    %22 = vector.load %arg4[%c0_25, %c0_26, %c0_27] : memref<8x1x32xf32, #tpu.memory_space<vmem>>, vector<1x1x32xf32>
    %23 = vector.shape_cast %22 : vector<1x1x32xf32> to vector<1x32xf32>
    %c1_28 = arith.constant 1 : index
    %c0_29 = arith.constant 0 : index
    %c0_30 = arith.constant 0 : index
    %24 = vector.load %arg4[%c1_28, %c0_29, %c0_30] : memref<8x1x32xf32, #tpu.memory_space<vmem>>, vector<1x1x32xf32>
    %25 = vector.shape_cast %24 : vector<1x1x32xf32> to vector<1x32xf32>
    %c2_31 = arith.constant 2 : index
    %c0_32 = arith.constant 0 : index
    %c0_33 = arith.constant 0 : index
    %26 = vector.load %arg4[%c2_31, %c0_32, %c0_33] : memref<8x1x32xf32, #tpu.memory_space<vmem>>, vector<1x1x32xf32>
    %27 = vector.shape_cast %26 : vector<1x1x32xf32> to vector<1x32xf32>
    %c4_34 = arith.constant 4 : index
    %c0_35 = arith.constant 0 : index
    %c0_36 = arith.constant 0 : index
    %28 = vector.load %arg4[%c4_34, %c0_35, %c0_36] : memref<8x1x32xf32, #tpu.memory_space<vmem>>, vector<1x1x32xf32>
    %29 = vector.shape_cast %28 : vector<1x1x32xf32> to vector<1x32xf32>
    %c5_37 = arith.constant 5 : index
    %c0_38 = arith.constant 0 : index
    %c0_39 = arith.constant 0 : index
    %30 = vector.load %arg4[%c5_37, %c0_38, %c0_39] : memref<8x1x32xf32, #tpu.memory_space<vmem>>, vector<1x1x32xf32>
    %31 = vector.shape_cast %30 : vector<1x1x32xf32> to vector<1x32xf32>
    %c6_40 = arith.constant 6 : index
    %c0_41 = arith.constant 0 : index
    %c0_42 = arith.constant 0 : index
    %32 = vector.load %arg4[%c6_40, %c0_41, %c0_42] : memref<8x1x32xf32, #tpu.memory_space<vmem>>, vector<1x1x32xf32>
    %33 = vector.shape_cast %32 : vector<1x1x32xf32> to vector<1x32xf32>
    %cst = arith.constant 0.000000e+00 : f32
    %34 = vector.broadcast %cst : f32 to vector<1x32xf32>
    %c0_i32 = arith.constant 0 : i32
    %c3_i32 = arith.constant 3 : i32
    %35 = arith.addi %c0_i32, %c3_i32 : i32
    %c1_i32 = arith.constant 1 : i32
    %36:4 = scf.for %arg6 = %c0_i32 to %35 step %c1_i32 iter_args(%arg7 = %34, %arg8 = %34, %arg9 = %34, %arg10 = %34) -> (vector<1x32xf32>, vector<1x32xf32>, vector<1x32xf32>, vector<1x32xf32>)  : i32 {
      %37 = arith.index_cast %arg6 : i32 to index
      %c0_44 = arith.constant 0 : index
      %c0_45 = arith.constant 0 : index
      %38 = vector.load %arg0[%37, %c0_44, %c0_45] : memref<3x4x32xf32, #tpu.memory_space<vmem>>, vector<1x4x32xf32>
      %39 = vector.shape_cast %38 : vector<1x4x32xf32> to vector<4x32xf32>
      %40 = vector.extract_strided_slice %39 {offsets = [0, 0], sizes = [1, 32], strides = [1, 1]} : vector<4x32xf32> to vector<1x32xf32>
      %cst_46 = arith.constant dense<0.000000e+00> : vector<1x32xf32>
      %41 = tpu.matmul %arg7, %0, %cst_46 {dimension_numbers = #tpu.dot_dimension_numbers<[1], [0], [0], [1], [0, 0, 1, 1], [], []>} : vector<1x32xf32>, vector<32x32xf32>, vector<1x32xf32> -> vector<1x32xf32>
      %42 = arith.addf %40, %41 : vector<1x32xf32>
      %cst_47 = arith.constant dense<0.000000e+00> : vector<1x64xf32>
      %43 = tpu.matmul %42, %2, %cst_47 {dimension_numbers = #tpu.dot_dimension_numbers<[1], [0], [0], [1], [0, 0, 1, 1], [], []>} : vector<1x32xf32>, vector<32x64xf32>, vector<1x64xf32> -> vector<1x64xf32>
      %44 = vector.extract_strided_slice %43 {offsets = [0, 0], sizes = [1, 32], strides = [1, 1]} : vector<1x64xf32> to vector<1x32xf32>
      %cst_48 = arith.constant dense<0.000000e+00> : vector<1x32xf32>
      %45 = tpu.matmul %arg8, %11, %cst_48 {dimension_numbers = #tpu.dot_dimension_numbers<[1], [0], [0], [1], [0, 0, 1, 1], [], []>} : vector<1x32xf32>, vector<32x32xf32>, vector<1x32xf32> -> vector<1x32xf32>
      %46 = arith.addf %44, %45 : vector<1x32xf32>
      %47 = arith.addf %46, %23 : vector<1x32xf32>
      %48 = arith.negf %47 : vector<1x32xf32>
      %49 = math.exp %48 : vector<1x32xf32>
      %cst_49 = arith.constant 1.000000e+00 : f32
      %50 = vector.broadcast %cst_49 : f32 to vector<1x32xf32>
      %51 = arith.addf %50, %49 : vector<1x32xf32>
      %52 = arith.divf %50, %51 : vector<1x32xf32>
      %53 = vector.extract_strided_slice %43 {offsets = [0, 32], sizes = [1, 32], strides = [1, 1]} : vector<1x64xf32> to vector<1x32xf32>
      %cst_50 = arith.constant dense<0.000000e+00> : vector<1x32xf32>
      %54 = tpu.matmul %arg9, %13, %cst_50 {dimension_numbers = #tpu.dot_dimension_numbers<[1], [0], [0], [1], [0, 0, 1, 1], [], []>} : vector<1x32xf32>, vector<32x32xf32>, vector<1x32xf32> -> vector<1x32xf32>
      %55 = arith.addf %53, %54 : vector<1x32xf32>
      %56 = arith.addf %55, %25 : vector<1x32xf32>
      %57 = arith.negf %56 : vector<1x32xf32>
      %58 = math.exp %57 : vector<1x32xf32>
      %cst_51 = arith.constant 1.000000e+00 : f32
      %59 = vector.broadcast %cst_51 : f32 to vector<1x32xf32>
      %60 = arith.addf %59, %58 : vector<1x32xf32>
      %61 = arith.divf %59, %60 : vector<1x32xf32>
      %cst_52 = arith.constant dense<0.000000e+00> : vector<1x64xf32>
      %62 = tpu.matmul %42, %4, %cst_52 {dimension_numbers = #tpu.dot_dimension_numbers<[1], [0], [0], [1], [0, 0, 1, 1], [], []>} : vector<1x32xf32>, vector<32x64xf32>, vector<1x64xf32> -> vector<1x64xf32>
      %63 = vector.extract_strided_slice %62 {offsets = [0, 0], sizes = [1, 32], strides = [1, 1]} : vector<1x64xf32> to vector<1x32xf32>
      %cst_53 = arith.constant dense<0.000000e+00> : vector<1x32xf32>
      %64 = tpu.matmul %arg10, %15, %cst_53 {dimension_numbers = #tpu.dot_dimension_numbers<[1], [0], [0], [1], [0, 0, 1, 1], [], []>} : vector<1x32xf32>, vector<32x32xf32>, vector<1x32xf32> -> vector<1x32xf32>
      %65 = arith.addf %63, %64 : vector<1x32xf32>
      %66 = arith.addf %65, %27 : vector<1x32xf32>
      %67 = arith.negf %66 : vector<1x32xf32>
      %68 = math.exp %67 : vector<1x32xf32>
      %cst_54 = arith.constant 1.000000e+00 : f32
      %69 = vector.broadcast %cst_54 : f32 to vector<1x32xf32>
      %70 = arith.addf %69, %68 : vector<1x32xf32>
      %71 = arith.divf %69, %70 : vector<1x32xf32>
      %72 = vector.extract_strided_slice %39 {offsets = [1, 0], sizes = [1, 32], strides = [1, 1]} : vector<4x32xf32> to vector<1x32xf32>
      %cst_55 = arith.constant dense<0.000000e+00> : vector<1x32xf32>
      %73 = tpu.matmul %42, %0, %cst_55 {dimension_numbers = #tpu.dot_dimension_numbers<[1], [0], [0], [1], [0, 0, 1, 1], [], []>} : vector<1x32xf32>, vector<32x32xf32>, vector<1x32xf32> -> vector<1x32xf32>
      %74 = arith.addf %72, %73 : vector<1x32xf32>
      %cst_56 = arith.constant dense<0.000000e+00> : vector<1x64xf32>
      %75 = tpu.matmul %52, %2, %cst_56 {dimension_numbers = #tpu.dot_dimension_numbers<[1], [0], [0], [1], [0, 0, 1, 1], [], []>} : vector<1x32xf32>, vector<32x64xf32>, vector<1x64xf32> -> vector<1x64xf32>
      %76 = vector.extract_strided_slice %75 {offsets = [0, 0], sizes = [1, 32], strides = [1, 1]} : vector<1x64xf32> to vector<1x32xf32>
      %cst_57 = arith.constant dense<0.000000e+00> : vector<1x32xf32>
      %77 = tpu.matmul %52, %11, %cst_57 {dimension_numbers = #tpu.dot_dimension_numbers<[1], [0], [0], [1], [0, 0, 1, 1], [], []>} : vector<1x32xf32>, vector<32x32xf32>, vector<1x32xf32> -> vector<1x32xf32>
      %78 = arith.addf %76, %77 : vector<1x32xf32>
      %79 = arith.addf %78, %23 : vector<1x32xf32>
      %80 = arith.negf %79 : vector<1x32xf32>
      %81 = math.exp %80 : vector<1x32xf32>
      %cst_58 = arith.constant 1.000000e+00 : f32
      %82 = vector.broadcast %cst_58 : f32 to vector<1x32xf32>
      %83 = arith.addf %82, %81 : vector<1x32xf32>
      %84 = arith.divf %82, %83 : vector<1x32xf32>
      %cst_59 = arith.constant dense<0.000000e+00> : vector<1x32xf32>
      %85 = tpu.matmul %84, %9, %cst_59 {dimension_numbers = #tpu.dot_dimension_numbers<[1], [0], [0], [1], [0, 0, 1, 1], [], []>} : vector<1x32xf32>, vector<32x32xf32>, vector<1x32xf32> -> vector<1x32xf32>
      %cst_60 = arith.constant dense<0.000000e+00> : vector<1x32xf32>
      %86 = tpu.matmul %61, %13, %cst_60 {dimension_numbers = #tpu.dot_dimension_numbers<[1], [0], [0], [1], [0, 0, 1, 1], [], []>} : vector<1x32xf32>, vector<32x32xf32>, vector<1x32xf32> -> vector<1x32xf32>
      %87 = arith.addf %85, %86 : vector<1x32xf32>
      %88 = arith.addf %87, %25 : vector<1x32xf32>
      %89 = arith.negf %88 : vector<1x32xf32>
      %90 = math.exp %89 : vector<1x32xf32>
      %cst_61 = arith.constant 1.000000e+00 : f32
      %91 = vector.broadcast %cst_61 : f32 to vector<1x32xf32>
      %92 = arith.addf %91, %90 : vector<1x32xf32>
      %93 = arith.divf %91, %92 : vector<1x32xf32>
      %cst_62 = arith.constant dense<0.000000e+00> : vector<1x64xf32>
      %94 = tpu.matmul %84, %8, %cst_62 {dimension_numbers = #tpu.dot_dimension_numbers<[1], [0], [0], [1], [0, 0, 1, 1], [], []>} : vector<1x32xf32>, vector<32x64xf32>, vector<1x64xf32> -> vector<1x64xf32>
      %95 = vector.extract_strided_slice %94 {offsets = [0, 0], sizes = [1, 32], strides = [1, 1]} : vector<1x64xf32> to vector<1x32xf32>
      %cst_63 = arith.constant dense<0.000000e+00> : vector<1x32xf32>
      %96 = tpu.matmul %71, %21, %cst_63 {dimension_numbers = #tpu.dot_dimension_numbers<[1], [0], [0], [1], [0, 0, 1, 1], [], []>} : vector<1x32xf32>, vector<32x32xf32>, vector<1x32xf32> -> vector<1x32xf32>
      %97 = arith.addf %95, %96 : vector<1x32xf32>
      %98 = arith.addf %97, %33 : vector<1x32xf32>
      %99 = arith.negf %98 : vector<1x32xf32>
      %100 = math.exp %99 : vector<1x32xf32>
      %cst_64 = arith.constant 1.000000e+00 : f32
      %101 = vector.broadcast %cst_64 : f32 to vector<1x32xf32>
      %102 = arith.addf %101, %100 : vector<1x32xf32>
      %103 = arith.divf %101, %102 : vector<1x32xf32>
      %104 = vector.extract_strided_slice %39 {offsets = [2, 0], sizes = [1, 32], strides = [1, 1]} : vector<4x32xf32> to vector<1x32xf32>
      %cst_65 = arith.constant dense<0.000000e+00> : vector<1x32xf32>
      %105 = tpu.matmul %74, %0, %cst_65 {dimension_numbers = #tpu.dot_dimension_numbers<[1], [0], [0], [1], [0, 0, 1, 1], [], []>} : vector<1x32xf32>, vector<32x32xf32>, vector<1x32xf32> -> vector<1x32xf32>
      %106 = arith.addf %104, %105 : vector<1x32xf32>
      %cst_66 = arith.constant dense<0.000000e+00> : vector<1x64xf32>
      %107 = tpu.matmul %93, %6, %cst_66 {dimension_numbers = #tpu.dot_dimension_numbers<[1], [0], [0], [1], [0, 0, 1, 1], [], []>} : vector<1x32xf32>, vector<32x64xf32>, vector<1x64xf32> -> vector<1x64xf32>
      %108 = vector.extract_strided_slice %107 {offsets = [0, 0], sizes = [1, 32], strides = [1, 1]} : vector<1x64xf32> to vector<1x32xf32>
      %cst_67 = arith.constant dense<0.000000e+00> : vector<1x32xf32>
      %109 = tpu.matmul %84, %17, %cst_67 {dimension_numbers = #tpu.dot_dimension_numbers<[1], [0], [0], [1], [0, 0, 1, 1], [], []>} : vector<1x32xf32>, vector<32x32xf32>, vector<1x32xf32> -> vector<1x32xf32>
      %110 = arith.addf %108, %109 : vector<1x32xf32>
      %111 = arith.addf %110, %29 : vector<1x32xf32>
      %112 = arith.negf %111 : vector<1x32xf32>
      %113 = math.exp %112 : vector<1x32xf32>
      %cst_68 = arith.constant 1.000000e+00 : f32
      %114 = vector.broadcast %cst_68 : f32 to vector<1x32xf32>
      %115 = arith.addf %114, %113 : vector<1x32xf32>
      %116 = arith.divf %114, %115 : vector<1x32xf32>
      %117 = vector.extract_strided_slice %107 {offsets = [0, 32], sizes = [1, 32], strides = [1, 1]} : vector<1x64xf32> to vector<1x32xf32>
      %cst_69 = arith.constant dense<0.000000e+00> : vector<1x32xf32>
      %118 = tpu.matmul %93, %19, %cst_69 {dimension_numbers = #tpu.dot_dimension_numbers<[1], [0], [0], [1], [0, 0, 1, 1], [], []>} : vector<1x32xf32>, vector<32x32xf32>, vector<1x32xf32> -> vector<1x32xf32>
      %119 = arith.addf %117, %118 : vector<1x32xf32>
      %120 = arith.addf %119, %31 : vector<1x32xf32>
      %121 = arith.negf %120 : vector<1x32xf32>
      %122 = math.exp %121 : vector<1x32xf32>
      %cst_70 = arith.constant 1.000000e+00 : f32
      %123 = vector.broadcast %cst_70 : f32 to vector<1x32xf32>
      %124 = arith.addf %123, %122 : vector<1x32xf32>
      %125 = arith.divf %123, %124 : vector<1x32xf32>
      %126 = vector.extract_strided_slice %39 {offsets = [3, 0], sizes = [1, 32], strides = [1, 1]} : vector<4x32xf32> to vector<1x32xf32>
      %cst_71 = arith.constant dense<0.000000e+00> : vector<1x32xf32>
      %127 = tpu.matmul %106, %0, %cst_71 {dimension_numbers = #tpu.dot_dimension_numbers<[1], [0], [0], [1], [0, 0, 1, 1], [], []>} : vector<1x32xf32>, vector<32x32xf32>, vector<1x32xf32> -> vector<1x32xf32>
      %128 = arith.addf %126, %127 : vector<1x32xf32>
      %cst_72 = arith.constant dense<0.000000e+00> : vector<1x64xf32>
      %129 = tpu.matmul %103, %6, %cst_72 {dimension_numbers = #tpu.dot_dimension_numbers<[1], [0], [0], [1], [0, 0, 1, 1], [], []>} : vector<1x32xf32>, vector<32x64xf32>, vector<1x64xf32> -> vector<1x64xf32>
      %130 = vector.extract_strided_slice %129 {offsets = [0, 0], sizes = [1, 32], strides = [1, 1]} : vector<1x64xf32> to vector<1x32xf32>
      %cst_73 = arith.constant dense<0.000000e+00> : vector<1x32xf32>
      %131 = tpu.matmul %116, %17, %cst_73 {dimension_numbers = #tpu.dot_dimension_numbers<[1], [0], [0], [1], [0, 0, 1, 1], [], []>} : vector<1x32xf32>, vector<32x32xf32>, vector<1x32xf32> -> vector<1x32xf32>
      %132 = arith.addf %130, %131 : vector<1x32xf32>
      %133 = arith.addf %132, %29 : vector<1x32xf32>
      %134 = arith.negf %133 : vector<1x32xf32>
      %135 = math.exp %134 : vector<1x32xf32>
      %cst_74 = arith.constant 1.000000e+00 : f32
      %136 = vector.broadcast %cst_74 : f32 to vector<1x32xf32>
      %137 = arith.addf %136, %135 : vector<1x32xf32>
      %138 = arith.divf %136, %137 : vector<1x32xf32>
      %139 = vector.extract_strided_slice %129 {offsets = [0, 32], sizes = [1, 32], strides = [1, 1]} : vector<1x64xf32> to vector<1x32xf32>
      %cst_75 = arith.constant dense<0.000000e+00> : vector<1x32xf32>
      %140 = tpu.matmul %125, %19, %cst_75 {dimension_numbers = #tpu.dot_dimension_numbers<[1], [0], [0], [1], [0, 0, 1, 1], [], []>} : vector<1x32xf32>, vector<32x32xf32>, vector<1x32xf32> -> vector<1x32xf32>
      %141 = arith.addf %139, %140 : vector<1x32xf32>
      %142 = arith.addf %141, %31 : vector<1x32xf32>
      %143 = arith.negf %142 : vector<1x32xf32>
      %144 = math.exp %143 : vector<1x32xf32>
      %cst_76 = arith.constant 1.000000e+00 : f32
      %145 = vector.broadcast %cst_76 : f32 to vector<1x32xf32>
      %146 = arith.addf %145, %144 : vector<1x32xf32>
      %147 = arith.divf %145, %146 : vector<1x32xf32>
      %148 = tpu.concatenate %42, %84, %125, %103 in 0 : vector<1x32xf32>, vector<1x32xf32>, vector<1x32xf32>, vector<1x32xf32> -> vector<4x32xf32>
      %149 = arith.index_cast %arg6 : i32 to index
      %c0_77 = arith.constant 0 : index
      %c0_78 = arith.constant 0 : index
      %150 = vector.load %arg5[%149, %c0_77, %c0_78] : memref<3x4x32xf32, #tpu.memory_space<vmem>>, vector<1x4x32xf32>
      %151 = vector.shape_cast %150 : vector<1x4x32xf32> to vector<4x32xf32>
      %152 = vector.shape_cast %148 : vector<4x32xf32> to vector<1x4x32xf32>
      tpu.vector_store %arg5[%149, %c0_77, %c0_78], %152 {strides = array<i32>} : memref<3x4x32xf32, #tpu.memory_space<vmem>>, vector<1x4x32xf32>,
      scf.yield %128, %138, %147, %103 : vector<1x32xf32>, vector<1x32xf32>, vector<1x32xf32>, vector<1x32xf32>
    }
    %c3_i32_43 = arith.constant 3 : i32
    return
  }
}

</mosaic_0001>

<llo_original>
// kernel: mtm_forward_pallas.1
$region0: #{mtm_forward_pallas.1}
  #allocation0 [shape = 'u32[]', space=smem, size = 0x4, offset = 0x4, fixed_abs, tag = 'smem constant byte address 0x4 - core index']
  #allocation1 [shape = 'u32[144,128]{1,0:T(1,128)}', space=vmem, size = 0x12000, scoped, tag = 'internal scratch']
  %s0 = inlined_call_operand.vmem [shape: f32[3,4,32], index: 0, kind: input, shape index: {}]
  %s1 = inlined_call_operand.vmem [shape: f32[32,32], index: 1, kind: input, shape index: {}]
  %s2 = inlined_call_operand.hbm [shape: f32[4,32,64], index: 2, kind: input, shape index: {}]
  %s3 = inlined_call_operand.hbm [shape: f32[8,32,32], index: 3, kind: input, shape index: {}]
  %s4 = inlined_call_operand.vmem [shape: f32[8,1,32], index: 4, kind: input, shape index: {}]
  %s5 = inlined_call_operand.vmem [shape: f32[3,4,32], index: 5, kind: output, shape index: {}]
  %s6 = sld [smem:[#allocation0]]
  $region45: #{mtm_forward_pallas.1} parent=0
    _
  %s8 = ssub.s32 1, %s6
  %s9 = scalar_select 0, %s8, %s6
  $region1: #{mtm_forward_pallas.1} parent=0
    #allocation2 [shape = 'u8[65536]{0}', space=vmem, size = 0x10000, scoped, tag = 'input window, operand 2, single buffered']
    #allocation3 [shape = 's32[1]{0}', space=sflag, size = 0x4, scoped, tag = 'scoped memory for mtm_forward_pallas.1']
    #allocation4 [shape = 'u8[131072]{0}', space=vmem, size = 0x20000, scoped, tag = 'input window, operand 3, single buffered']
    #allocation5 [shape = 's32[1]{0}', space=sflag, size = 0x4, scoped, tag = 'scoped memory for mtm_forward_pallas.1']
    %10 = vsyncpa [#allocation3], 0
    %11 = vsyncpa [#allocation5], 0
    // Predicated region
    $region2: #{mtm_forward_pallas.1} parent=1 // pred_check
      _
    $region3: #{mtm_forward_pallas.1} parent=1 // pred_check_branch
      %13 = sbr.rel (0) target = $region5
    $region4: #{mtm_forward_pallas.1} parent=1 // pred_region
      _
    $region5: #{mtm_forward_pallas.1} parent=1 // pred_fallthru
      _
    // Predicated region
    $region6: #{mtm_forward_pallas.1} parent=1 // pred_check
      _
    $region7: #{mtm_forward_pallas.1} parent=1 // pred_check_branch
      %15 = sbr.rel (0) target = $region9
    $region8: #{mtm_forward_pallas.1} parent=1 // pred_region
      _
    $region9: #{mtm_forward_pallas.1} parent=1 // pred_fallthru
      _
    // Predicated region
    $region10: #{mtm_forward_pallas.1} parent=1 // pred_check
      _
    $region11: #{mtm_forward_pallas.1} parent=1 // pred_check_branch
      %17 = sbr.rel (0) target = $region13
    $region12: #{mtm_forward_pallas.1} parent=1 // pred_region
      %s19 = ssub.s32 2048, 2048
      %20 = vsyncadd [#allocation3], %s19
      %s21 = sshll.u32 [#allocation2], 4
      %s22 = int_to_ptr.vmem [resolvable:$true] %s21
      %27 = dma.hbm_to_vmem [thread:$0]  %s2, 2048, %s22, [#allocation3], 128, 128, 8
    $region13: #{mtm_forward_pallas.1} parent=1 // pred_fallthru
      _
    // Predicated region
    $region14: #{mtm_forward_pallas.1} parent=1 // pred_check
      _
    $region15: #{mtm_forward_pallas.1} parent=1 // pred_check_branch
      %29 = sbr.rel (0) target = $region17
    $region16: #{mtm_forward_pallas.1} parent=1 // pred_region
      %s31 = ssub.s32 4096, 4096
      %32 = vsyncadd [#allocation5], %s31
      %s33 = sshll.u32 [#allocation4], 4
      %s34 = int_to_ptr.vmem [resolvable:$true] %s33
      %39 = dma.hbm_to_vmem [thread:$0]  %s3, 4096, %s34, [#allocation5], 128, 128, 8
    $region17: #{mtm_forward_pallas.1} parent=1 // pred_fallthru
      _
    // Predicated region
    $region18: #{mtm_forward_pallas.1} parent=1 // pred_check
      _
    $region19: #{mtm_forward_pallas.1} parent=1 // pred_check_branch
      %41 = sbr.rel (0) target = $region21
    $region20: #{mtm_forward_pallas.1} parent=1 // pred_region
      _
    $region21: #{mtm_forward_pallas.1} parent=1 // pred_fallthru
      _
    // Predicated region
    $region22: #{mtm_forward_pallas.1} parent=1 // pred_check
      _
    $region23: #{mtm_forward_pallas.1} parent=1 // pred_check_branch
      %43 = sbr.rel (0) target = $region25
    $region24: #{mtm_forward_pallas.1} parent=1 // pred_region
      %44 = dma.done [#allocation3], 2048
    $region25: #{mtm_forward_pallas.1} parent=1 // pred_fallthru
      _
    // Predicated region
    $region26: #{mtm_forward_pallas.1} parent=1 // pred_check
      _
    $region27: #{mtm_forward_pallas.1} parent=1 // pred_check_branch
      %46 = sbr.rel (0) target = $region29
    $region28: #{mtm_forward_pallas.1} parent=1 // pred_region
      %47 = dma.done [#allocation5], 4096
    $region29: #{mtm_forward_pallas.1} parent=1 // pred_fallthru
      _
    %v48 = vld [vmem:[%s1] sm:$0xff]
    %v49 = vld [vmem:[%s1 + $0x8] sm:$0xff]
    %v50 = vld [vmem:[%s1 + $0x10] sm:$0xff]
    %v51 = vld [vmem:[%s1 + $0x18] sm:$0xff]
    %v52 = vld [vmem:[#allocation2] sm:$0xff]
    %v53 = vld [vmem:[#allocation2 + $0x8] sm:$0xff]
    %v54 = vld [vmem:[#allocation2 + $0x10] sm:$0xff]
    %v55 = vld [vmem:[#allocation2 + $0x18] sm:$0xff]
    %s56 = scalar_lea.vmem [#allocation2], 32
    %v57 = vld [vmem:[%s56] sm:$0xff]
    %v58 = vld [vmem:[%s56 + $0x8] sm:$0xff]
    %v59 = vld [vmem:[%s56 + $0x10] sm:$0xff]
    %v60 = vld [vmem:[%s56 + $0x18] sm:$0xff]
    %s61 = scalar_lea.vmem [#allocation2], 64
    %v62 = vld [vmem:[%s61] sm:$0xff]
    %v63 = vld [vmem:[%s61 + $0x8] sm:$0xff]
    %v64 = vld [vmem:[%s61 + $0x10] sm:$0xff]
    %v65 = vld [vmem:[%s61 + $0x18] sm:$0xff]
    %s66 = scalar_lea.vmem [#allocation2], 96
    %v67 = vld [vmem:[%s66] sm:$0xff]
    %v68 = vld [vmem:[%s66 + $0x8] sm:$0xff]
    %v69 = vld [vmem:[%s66 + $0x10] sm:$0xff]
    %v70 = vld [vmem:[%s66 + $0x18] sm:$0xff]
    %v71 = vld [vmem:[#allocation4] sm:$0xff]
    %v72 = vld [vmem:[#allocation4 + $0x8] sm:$0xff]
    %v73 = vld [vmem:[#allocation4 + $0x10] sm:$0xff]
    %v74 = vld [vmem:[#allocation4 + $0x18] sm:$0xff]
    %s75 = scalar_lea.vmem [#allocation4], 32
    %v76 = vld [vmem:[%s75] sm:$0xff]
    %v77 = vld [vmem:[%s75 + $0x8] sm:$0xff]
    %v78 = vld [vmem:[%s75 + $0x10] sm:$0xff]
    %v79 = vld [vmem:[%s75 + $0x18] sm:$0xff]
    %s80 = scalar_lea.vmem [#allocation4], 64
    %v81 = vld [vmem:[%s80] sm:$0xff]
    %v82 = vld [vmem:[%s80 + $0x8] sm:$0xff]
    %v83 = vld [vmem:[%s80 + $0x10] sm:$0xff]
    %v84 = vld [vmem:[%s80 + $0x18] sm:$0xff]
    %s85 = scalar_lea.vmem [#allocation4], 128
    %v86 = vld [vmem:[%s85] sm:$0xff]
    %v87 = vld [vmem:[%s85 + $0x8] sm:$0xff]
    %v88 = vld [vmem:[%s85 + $0x10] sm:$0xff]
    %v89 = vld [vmem:[%s85 + $0x18] sm:$0xff]
    %s90 = scalar_lea.vmem [#allocation4], 160
    %v91 = vld [vmem:[%s90] sm:$0xff]
    %v92 = vld [vmem:[%s90 + $0x8] sm:$0xff]
    %v93 = vld [vmem:[%s90 + $0x10] sm:$0xff]
    %v94 = vld [vmem:[%s90 + $0x18] sm:$0xff]
    %s95 = scalar_lea.vmem [#allocation4], 192
    %v96 = vld [vmem:[%s95] sm:$0xff]
    %v97 = vld [vmem:[%s95 + $0x8] sm:$0xff]
    %v98 = vld [vmem:[%s95 + $0x10] sm:$0xff]
    %v99 = vld [vmem:[%s95 + $0x18] sm:$0xff]
    %v100 = vld [vmem:[%s4] sm:$0x1]
    %s101 = scalar_lea.vmem %s4, 1
    %v102 = vld [vmem:[%s101] sm:$0x1]
    %s103 = scalar_lea.vmem %s4, 2
    %v104 = vld [vmem:[%s103] sm:$0x1]
    %s105 = scalar_lea.vmem %s4, 4
    %v106 = vld [vmem:[%s105] sm:$0x1]
    %s107 = scalar_lea.vmem %s4, 5
    %v108 = vld [vmem:[%s107] sm:$0x1]
    %s109 = scalar_lea.vmem %s4, 6
    %v110 = vld [vmem:[%s109] sm:$0x1]
    loop: start=0, step=1, limit=3
    $region30: #{mtm_forward_pallas.1} parent=1 // loop_pre_header
      _
    $region31: #{mtm_forward_pallas.1} parent=1 // loop_header
      %s112 = sphi 0, %s116
      %p113 = scmp.ge.s32.totalorder %s112, 3
      %v117 = vphi 0.0, %v1543
      %v118 = vphi 0.0, %v1697
      %v119 = vphi 0.0, %v1784
      %v120 = vphi 0.0, %v1146
    $region32: #{mtm_forward_pallas.1} parent=1 // loop_header_branch
      %115 = sbr.rel (%p113) target = $region36
    $region33: #{mtm_forward_pallas.1} parent=1 // loop_body
      %s121 = smul.u32 %s112, 4
      %s122 = scalar_lea.vmem %s0, %s121
      %v123 = vld [vmem:[%s122] sm:$0xf]
      %v125 = vrot.slane %v117, 3
      %vm126 = vcmask 261120
      %v127 = vsel %vm126, %v125, 0
      %129 = vmatprep.subr.mxu0 0.0
      %130 = vmatpush1.msra.mxu0 0.0
      %131 = vmatprep.subr.mxu0 0.0
      %132 = vmatpush1.msra.mxu0 0.0
      %133 = vmatprep.subr.mxu0 0.0
      %134 = vmatpush1.msra.mxu0 0.0
      %135 = vmatprep.subr.mxu0 0.0
      %136 = vmatpush1.msra.mxu0 0.0
      %137 = vmatprep.subr.mxu0 0.0
      %138 = vmatpush1.msra.mxu0 0.0
      %139 = vmatprep.subr.mxu0 0.0
      %140 = vmatpush1.msra.mxu0 0.0
      %141 = vmatprep.subr.mxu0 0.0
      %142 = vmatpush1.msra.mxu0 0.0
      %143 = vmatprep.subr.mxu0 0.0
      %144 = vmatpush1.msra.mxu0 0.0
      %145 = vmatprep.subr.mxu0 0.0
      %146 = vmatpush1.msra.mxu0 0.0
      %147 = vmatprep.subr.mxu0 0.0
      %148 = vmatpush1.msra.mxu0 0.0
      %149 = vmatprep.subr.mxu0 0.0
      %150 = vmatpush1.msra.mxu0 0.0
      %151 = vmatprep.subr.mxu0 0.0
      %152 = vmatpush1.msra.mxu0 0.0
      %153 = vmatprep.subr.mxu0 0.0
      %154 = vmatpush1.msra.mxu0 %v51
      %155 = vmatprep.subr.mxu0 0.0
      %156 = vmatpush1.msra.mxu0 %v50
      %157 = vmatprep.subr.mxu0 0.0
      %158 = vmatpush1.msra.mxu0 %v49
      %159 = vmatprep.subr.mxu0 0.0
      %160 = vmatpush1.msra.mxu0 %v48
      %161 = vmatprep.subr.mxu0 0.0
      %162 = vmatpush2.msra.mxu0 0.0
      %163 = vmatprep.subr.mxu0 0.0
      %164 = vmatpush2.msra.mxu0 0.0
      %165 = vmatprep.subr.mxu0 0.0
      %166 = vmatpush2.msra.mxu0 0.0
      %167 = vmatprep.subr.mxu0 0.0
      %168 = vmatpush2.msra.mxu0 0.0
      %169 = vmatprep.subr.mxu0 0.0
      %170 = vmatpush2.msra.mxu0 0.0
      %171 = vmatprep.subr.mxu0 0.0
      %172 = vmatpush2.msra.mxu0 0.0
      %173 = vmatprep.subr.mxu0 0.0
      %174 = vmatpush2.msra.mxu0 0.0
      %175 = vmatprep.subr.mxu0 0.0
      %176 = vmatpush2.msra.mxu0 0.0
      %177 = vmatprep.subr.mxu0 0.0
      %178 = vmatpush2.msra.mxu0 0.0
      %179 = vmatprep.subr.mxu0 0.0
      %180 = vmatpush2.msra.mxu0 0.0
      %181 = vmatprep.subr.mxu0 0.0
      %182 = vmatpush2.msra.mxu0 0.0
      %183 = vmatprep.subr.mxu0 0.0
      %184 = vmatpush2.msra.mxu0 0.0
      %185 = vmatprep.subr.mxu0 0.0
      %186 = vmatpush2.msra.mxu0 0.0
      %187 = vmatprep.subr.mxu0 0.0
      %188 = vmatpush2.msra.mxu0 0.0
      %189 = vmatprep.subr.mxu0 0.0
      %190 = vmatpush2.msra.mxu0 0.0
      %191 = vmatprep.subr.mxu0 0.0
      %192 = vmatpush2.msra.mxu0 0.0
      %193 = vmatprep.mubr.f32.mxu0 0.0
      %194 = vmatmul.mubr.f32.gmra.mxu0 %v127
      %v195 = vpop.f32.mrf.mxu0
      %v196 = vadd.f32 0.0, %v195
      %v197 = vpop.f32.mrf.mxu0
      %198 = vdwg.mxu0
      %v199 = vadd.f32 %v123, %v196
      %v201 = vsel %vm126, %v199, 0
      %203 = vmatprep.subr.mxu0 0.0
      %204 = vmatpush1.msra.mxu0 0.0
      %205 = vmatprep.subr.mxu0 0.0
      %206 = vmatpush1.msra.mxu0 0.0
      %207 = vmatprep.subr.mxu0 0.0
      %208 = vmatpush1.msra.mxu0 0.0
      %209 = vmatprep.subr.mxu0 0.0
      %210 = vmatpush1.msra.mxu0 0.0
      %211 = vmatprep.subr.mxu0 0.0
      %212 = vmatpush1.msra.mxu0 0.0
      %213 = vmatprep.subr.mxu0 0.0
      %214 = vmatpush1.msra.mxu0 0.0
      %215 = vmatprep.subr.mxu0 0.0
      %216 = vmatpush1.msra.mxu0 0.0
      %217 = vmatprep.subr.mxu0 0.0
      %218 = vmatpush1.msra.mxu0 0.0
      %219 = vmatprep.subr.mxu0 0.0
      %220 = vmatpush1.msra.mxu0 0.0
      %221 = vmatprep.subr.mxu0 0.0
      %222 = vmatpush1.msra.mxu0 0.0
      %223 = vmatprep.subr.mxu0 0.0
      %224 = vmatpush1.msra.mxu0 0.0
      %225 = vmatprep.subr.mxu0 0.0
      %226 = vmatpush1.msra.mxu0 0.0
      %227 = vmatprep.subr.mxu0 0.0
      %228 = vmatpush1.msra.mxu0 %v55
      %229 = vmatprep.subr.mxu0 0.0
      %230 = vmatpush1.msra.mxu0 %v54
      %231 = vmatprep.subr.mxu0 0.0
      %232 = vmatpush1.msra.mxu0 %v53
      %233 = vmatprep.subr.mxu0 0.0
      %234 = vmatpush1.msra.mxu0 %v52
      %235 = vmatprep.subr.mxu0 0.0
      %236 = vmatpush2.msra.mxu0 0.0
      %237 = vmatprep.subr.mxu0 0.0
      %238 = vmatpush2.msra.mxu0 0.0
      %239 = vmatprep.subr.mxu0 0.0
      %240 = vmatpush2.msra.mxu0 0.0
      %241 = vmatprep.subr.mxu0 0.0
      %242 = vmatpush2.msra.mxu0 0.0
      %243 = vmatprep.subr.mxu0 0.0
      %244 = vmatpush2.msra.mxu0 0.0
      %245 = vmatprep.subr.mxu0 0.0
      %246 = vmatpush2.msra.mxu0 0.0
      %247 = vmatprep.subr.mxu0 0.0
      %248 = vmatpush2.msra.mxu0 0.0
      %249 = vmatprep.subr.mxu0 0.0
      %250 = vmatpush2.msra.mxu0 0.0
      %251 = vmatprep.subr.mxu0 0.0
      %252 = vmatpush2.msra.mxu0 0.0
      %253 = vmatprep.subr.mxu0 0.0
      %254 = vmatpush2.msra.mxu0 0.0
      %255 = vmatprep.subr.mxu0 0.0
      %256 = vmatpush2.msra.mxu0 0.0
      %257 = vmatprep.subr.mxu0 0.0
      %258 = vmatpush2.msra.mxu0 0.0
      %259 = vmatprep.subr.mxu0 0.0
      %260 = vmatpush2.msra.mxu0 0.0
      %261 = vmatprep.subr.mxu0 0.0
      %262 = vmatpush2.msra.mxu0 0.0
      %263 = vmatprep.subr.mxu0 0.0
      %264 = vmatpush2.msra.mxu0 0.0
      %265 = vmatprep.subr.mxu0 0.0
      %266 = vmatpush2.msra.mxu0 0.0
      %267 = vmatprep.mubr.f32.mxu0 0.0
      %268 = vmatmul.mubr.f32.gmra.mxu0 %v201
      %v269 = vpop.f32.mrf.mxu0
      %v270 = vadd.f32 0.0, %v269
      %v271 = vpop.f32.mrf.mxu0
      %272 = vdwg.mxu0
      %v274 = vsel %vm126, %v118, 0
      %276 = vmatprep.subr.mxu0 0.0
      %277 = vmatpush1.msra.mxu0 0.0
      %278 = vmatprep.subr.mxu0 0.0
      %279 = vmatpush1.msra.mxu0 0.0
      %280 = vmatprep.subr.mxu0 0.0
      %281 = vmatpush1.msra.mxu0 0.0
      %282 = vmatprep.subr.mxu0 0.0
      %283 = vmatpush1.msra.mxu0 0.0
      %284 = vmatprep.subr.mxu0 0.0
      %285 = vmatpush1.msra.mxu0 0.0
      %286 = vmatprep.subr.mxu0 0.0
      %287 = vmatpush1.msra.mxu0 0.0
      %288 = vmatprep.subr.mxu0 0.0
      %289 = vmatpush1.msra.mxu0 0.0
      %290 = vmatprep.subr.mxu0 0.0
      %291 = vmatpush1.msra.mxu0 0.0
      %292 = vmatprep.subr.mxu0 0.0
      %293 = vmatpush1.msra.mxu0 0.0
      %294 = vmatprep.subr.mxu0 0.0
      %295 = vmatpush1.msra.mxu0 0.0
      %296 = vmatprep.subr.mxu0 0.0
      %297 = vmatpush1.msra.mxu0 0.0
      %298 = vmatprep.subr.mxu0 0.0
      %299 = vmatpush1.msra.mxu0 0.0
      %300 = vmatprep.subr.mxu0 0.0
      %301 = vmatpush1.msra.mxu0 %v74
      %302 = vmatprep.subr.mxu0 0.0
      %303 = vmatpush1.msra.mxu0 %v73
      %304 = vmatprep.subr.mxu0 0.0
      %305 = vmatpush1.msra.mxu0 %v72
      %306 = vmatprep.subr.mxu0 0.0
      %307 = vmatpush1.msra.mxu0 %v71
      %308 = vmatprep.subr.mxu0 0.0
      %309 = vmatpush2.msra.mxu0 0.0
      %310 = vmatprep.subr.mxu0 0.0
      %311 = vmatpush2.msra.mxu0 0.0
      %312 = vmatprep.subr.mxu0 0.0
      %313 = vmatpush2.msra.mxu0 0.0
      %314 = vmatprep.subr.mxu0 0.0
      %315 = vmatpush2.msra.mxu0 0.0
      %316 = vmatprep.subr.mxu0 0.0
      %317 = vmatpush2.msra.mxu0 0.0
      %318 = vmatprep.subr.mxu0 0.0
      %319 = vmatpush2.msra.mxu0 0.0
      %320 = vmatprep.subr.mxu0 0.0
      %321 = vmatpush2.msra.mxu0 0.0
      %322 = vmatprep.subr.mxu0 0.0
      %323 = vmatpush2.msra.mxu0 0.0
      %324 = vmatprep.subr.mxu0 0.0
      %325 = vmatpush2.msra.mxu0 0.0
      %326 = vmatprep.subr.mxu0 0.0
      %327 = vmatpush2.msra.mxu0 0.0
      %328 = vmatprep.subr.mxu0 0.0
      %329 = vmatpush2.msra.mxu0 0.0
      %330 = vmatprep.subr.mxu0 0.0
      %331 = vmatpush2.msra.mxu0 0.0
      %332 = vmatprep.subr.mxu0 0.0
      %333 = vmatpush2.msra.mxu0 0.0
      %334 = vmatprep.subr.mxu0 0.0
      %335 = vmatpush2.msra.mxu0 0.0
      %336 = vmatprep.subr.mxu0 0.0
      %337 = vmatpush2.msra.mxu0 0.0
      %338 = vmatprep.subr.mxu0 0.0
      %339 = vmatpush2.msra.mxu0 0.0
      %340 = vmatprep.mubr.f32.mxu0 0.0
      %341 = vmatmul.mubr.f32.gmra.mxu0 %v274
      %v342 = vpop.f32.mrf.mxu0
      %v343 = vadd.f32 0.0, %v342
      %v344 = vpop.f32.mrf.mxu0
      %345 = vdwg.mxu0
      %v346 = vadd.f32 %v270, %v343
      %v347 = vadd.f32 %v346, %v100
      %v348 = vxor.u32 %v347, 2147483648
      %v349 = vmul.f32 %v348, 1.442695
      %v350 = vpow.pop %v349
      %v351 = vadd.f32 %v350, 1.0
      %v352 = vrcp.pop %v351
      %v353 = vmul.f32 1.0, %v352
      %355 = vrot.lane.b32.xlu0 %v119, 96
      %v356 = vpop.permute.xlu0 %355
      %v357 = vsel %vm126, %v356, 0
      %359 = vmatprep.subr.mxu0 0.0
      %360 = vmatpush1.msra.mxu0 0.0
      %361 = vmatprep.subr.mxu0 0.0
      %362 = vmatpush1.msra.mxu0 0.0
      %363 = vmatprep.subr.mxu0 0.0
      %364 = vmatpush1.msra.mxu0 0.0
      %365 = vmatprep.subr.mxu0 0.0
      %366 = vmatpush1.msra.mxu0 0.0
      %367 = vmatprep.subr.mxu0 0.0
      %368 = vmatpush1.msra.mxu0 0.0
      %369 = vmatprep.subr.mxu0 0.0
      %370 = vmatpush1.msra.mxu0 0.0
      %371 = vmatprep.subr.mxu0 0.0
      %372 = vmatpush1.msra.mxu0 0.0
      %373 = vmatprep.subr.mxu0 0.0
      %374 = vmatpush1.msra.mxu0 0.0
      %375 = vmatprep.subr.mxu0 0.0
      %376 = vmatpush1.msra.mxu0 0.0
      %377 = vmatprep.subr.mxu0 0.0
      %378 = vmatpush1.msra.mxu0 0.0
      %379 = vmatprep.subr.mxu0 0.0
      %380 = vmatpush1.msra.mxu0 0.0
      %381 = vmatprep.subr.mxu0 0.0
      %382 = vmatpush1.msra.mxu0 0.0
      %383 = vmatprep.subr.mxu0 0.0
      %384 = vmatpush1.msra.mxu0 %v79
      %385 = vmatprep.subr.mxu0 0.0
      %386 = vmatpush1.msra.mxu0 %v78
      %387 = vmatprep.subr.mxu0 0.0
      %388 = vmatpush1.msra.mxu0 %v77
      %389 = vmatprep.subr.mxu0 0.0
      %390 = vmatpush1.msra.mxu0 %v76
      %391 = vmatprep.subr.mxu0 0.0
      %392 = vmatpush2.msra.mxu0 0.0
      %393 = vmatprep.subr.mxu0 0.0
      %394 = vmatpush2.msra.mxu0 0.0
      %395 = vmatprep.subr.mxu0 0.0
      %396 = vmatpush2.msra.mxu0 0.0
      %397 = vmatprep.subr.mxu0 0.0
      %398 = vmatpush2.msra.mxu0 0.0
      %399 = vmatprep.subr.mxu0 0.0
      %400 = vmatpush2.msra.mxu0 0.0
      %401 = vmatprep.subr.mxu0 0.0
      %402 = vmatpush2.msra.mxu0 0.0
      %403 = vmatprep.subr.mxu0 0.0
      %404 = vmatpush2.msra.mxu0 0.0
      %405 = vmatprep.subr.mxu0 0.0
      %406 = vmatpush2.msra.mxu0 0.0
      %407 = vmatprep.subr.mxu0 0.0
      %408 = vmatpush2.msra.mxu0 0.0
      %409 = vmatprep.subr.mxu0 0.0
      %410 = vmatpush2.msra.mxu0 0.0
      %411 = vmatprep.subr.mxu0 0.0
      %412 = vmatpush2.msra.mxu0 0.0
      %413 = vmatprep.subr.mxu0 0.0
      %414 = vmatpush2.msra.mxu0 0.0
      %415 = vmatprep.subr.mxu0 0.0
      %416 = vmatpush2.msra.mxu0 0.0
      %417 = vmatprep.subr.mxu0 0.0
      %418 = vmatpush2.msra.mxu0 0.0
      %419 = vmatprep.subr.mxu0 0.0
      %420 = vmatpush2.msra.mxu0 0.0
      %421 = vmatprep.subr.mxu0 0.0
      %422 = vmatpush2.msra.mxu0 0.0
      %423 = vmatprep.mubr.f32.mxu0 0.0
      %424 = vmatmul.mubr.f32.gmra.mxu0 %v357
      %v425 = vpop.f32.mrf.mxu0
      %v426 = vadd.f32 0.0, %v425
      %v427 = vpop.f32.mrf.mxu0
      %428 = vdwg.mxu0
      %430 = vrot.lane.b32.xlu0 %v426, 32
      %v431 = vpop.permute.xlu0 %430
      %v433 = vadd.f32 %v270, %v431
      %v435 = vlaneseq
      %v436 = vshrl.u32 %v435, 7
      %v437 = vsub.s32 0, %v436
      %v438 = vrot.slane %v102, %v437
      %439 = vrot.lane.b32.xlu0 %v438, 32
      %v440 = vpop.permute.xlu0 %439
      %v442 = vadd.f32 %v433, %v440
      %v443 = vxor.u32 %v442, 2147483648
      %v444 = vmul.f32 %v443, 1.442695
      %v445 = vpow.pop %v444
      %v446 = vadd.f32 %v445, 1.0
      %v447 = vrcp.pop %v446
      %v448 = vmul.f32 1.0, %v447
      %449 = vmatprep.subr.mxu0 0.0
      %450 = vmatpush1.msra.mxu0 0.0
      %451 = vmatprep.subr.mxu0 0.0
      %452 = vmatpush1.msra.mxu0 0.0
      %453 = vmatprep.subr.mxu0 0.0
      %454 = vmatpush1.msra.mxu0 0.0
      %455 = vmatprep.subr.mxu0 0.0
      %456 = vmatpush1.msra.mxu0 0.0
      %457 = vmatprep.subr.mxu0 0.0
      %458 = vmatpush1.msra.mxu0 0.0
      %459 = vmatprep.subr.mxu0 0.0
      %460 = vmatpush1.msra.mxu0 0.0
      %461 = vmatprep.subr.mxu0 0.0
      %462 = vmatpush1.msra.mxu0 0.0
      %463 = vmatprep.subr.mxu0 0.0
      %464 = vmatpush1.msra.mxu0 0.0
      %465 = vmatprep.subr.mxu0 0.0
      %466 = vmatpush1.msra.mxu0 0.0
      %467 = vmatprep.subr.mxu0 0.0
      %468 = vmatpush1.msra.mxu0 0.0
      %469 = vmatprep.subr.mxu0 0.0
      %470 = vmatpush1.msra.mxu0 0.0
      %471 = vmatprep.subr.mxu0 0.0
      %472 = vmatpush1.msra.mxu0 0.0
      %473 = vmatprep.subr.mxu0 0.0
      %474 = vmatpush1.msra.mxu0 %v60
      %475 = vmatprep.subr.mxu0 0.0
      %476 = vmatpush1.msra.mxu0 %v59
      %477 = vmatprep.subr.mxu0 0.0
      %478 = vmatpush1.msra.mxu0 %v58
      %479 = vmatprep.subr.mxu0 0.0
      %480 = vmatpush1.msra.mxu0 %v57
      %481 = vmatprep.subr.mxu0 0.0
      %482 = vmatpush2.msra.mxu0 0.0
      %483 = vmatprep.subr.mxu0 0.0
      %484 = vmatpush2.msra.mxu0 0.0
      %485 = vmatprep.subr.mxu0 0.0
      %486 = vmatpush2.msra.mxu0 0.0
      %487 = vmatprep.subr.mxu0 0.0
      %488 = vmatpush2.msra.mxu0 0.0
      %489 = vmatprep.subr.mxu0 0.0
      %490 = vmatpush2.msra.mxu0 0.0
      %491 = vmatprep.subr.mxu0 0.0
      %492 = vmatpush2.msra.mxu0 0.0
      %493 = vmatprep.subr.mxu0 0.0
      %494 = vmatpush2.msra.mxu0 0.0
      %495 = vmatprep.subr.mxu0 0.0
      %496 = vmatpush2.msra.mxu0 0.0
      %497 = vmatprep.subr.mxu0 0.0
      %498 = vmatpush2.msra.mxu0 0.0
      %499 = vmatprep.subr.mxu0 0.0
      %500 = vmatpush2.msra.mxu0 0.0
      %501 = vmatprep.subr.mxu0 0.0
      %502 = vmatpush2.msra.mxu0 0.0
      %503 = vmatprep.subr.mxu0 0.0
      %504 = vmatpush2.msra.mxu0 0.0
      %505 = vmatprep.subr.mxu0 0.0
      %506 = vmatpush2.msra.mxu0 0.0
      %507 = vmatprep.subr.mxu0 0.0
      %508 = vmatpush2.msra.mxu0 0.0
      %509 = vmatprep.subr.mxu0 0.0
      %510 = vmatpush2.msra.mxu0 0.0
      %511 = vmatprep.subr.mxu0 0.0
      %512 = vmatpush2.msra.mxu0 0.0
      %513 = vmatprep.mubr.f32.mxu0 0.0
      %514 = vmatmul.mubr.f32.gmra.mxu0 %v201
      %v515 = vpop.f32.mrf.mxu0
      %v516 = vadd.f32 0.0, %v515
      %v517 = vpop.f32.mrf.mxu0
      %518 = vdwg.mxu0
      %v520 = vsel %vm126, %v120, 0
      %522 = vmatprep.subr.mxu0 0.0
      %523 = vmatpush1.msra.mxu0 0.0
      %524 = vmatprep.subr.mxu0 0.0
      %525 = vmatpush1.msra.mxu0 0.0
      %526 = vmatprep.subr.mxu0 0.0
      %527 = vmatpush1.msra.mxu0 0.0
      %528 = vmatprep.subr.mxu0 0.0
      %529 = vmatpush1.msra.mxu0 0.0
      %530 = vmatprep.subr.mxu0 0.0
      %531 = vmatpush1.msra.mxu0 0.0
      %532 = vmatprep.subr.mxu0 0.0
      %533 = vmatpush1.msra.mxu0 0.0
      %534 = vmatprep.subr.mxu0 0.0
      %535 = vmatpush1.msra.mxu0 0.0
      %536 = vmatprep.subr.mxu0 0.0
      %537 = vmatpush1.msra.mxu0 0.0
      %538 = vmatprep.subr.mxu0 0.0
      %539 = vmatpush1.msra.mxu0 0.0
      %540 = vmatprep.subr.mxu0 0.0
      %541 = vmatpush1.msra.mxu0 0.0
      %542 = vmatprep.subr.mxu0 0.0
      %543 = vmatpush1.msra.mxu0 0.0
      %544 = vmatprep.subr.mxu0 0.0
      %545 = vmatpush1.msra.mxu0 0.0
      %546 = vmatprep.subr.mxu0 0.0
      %547 = vmatpush1.msra.mxu0 %v84
      %548 = vmatprep.subr.mxu0 0.0
      %549 = vmatpush1.msra.mxu0 %v83
      %550 = vmatprep.subr.mxu0 0.0
      %551 = vmatpush1.msra.mxu0 %v82
      %552 = vmatprep.subr.mxu0 0.0
      %553 = vmatpush1.msra.mxu0 %v81
      %554 = vmatprep.subr.mxu0 0.0
      %555 = vmatpush2.msra.mxu0 0.0
      %556 = vmatprep.subr.mxu0 0.0
      %557 = vmatpush2.msra.mxu0 0.0
      %558 = vmatprep.subr.mxu0 0.0
      %559 = vmatpush2.msra.mxu0 0.0
      %560 = vmatprep.subr.mxu0 0.0
      %561 = vmatpush2.msra.mxu0 0.0
      %562 = vmatprep.subr.mxu0 0.0
      %563 = vmatpush2.msra.mxu0 0.0
      %564 = vmatprep.subr.mxu0 0.0
      %565 = vmatpush2.msra.mxu0 0.0
      %566 = vmatprep.subr.mxu0 0.0
      %567 = vmatpush2.msra.mxu0 0.0
      %568 = vmatprep.subr.mxu0 0.0
      %569 = vmatpush2.msra.mxu0 0.0
      %570 = vmatprep.subr.mxu0 0.0
      %571 = vmatpush2.msra.mxu0 0.0
      %572 = vmatprep.subr.mxu0 0.0
      %573 = vmatpush2.msra.mxu0 0.0
      %574 = vmatprep.subr.mxu0 0.0
      %575 = vmatpush2.msra.mxu0 0.0
      %576 = vmatprep.subr.mxu0 0.0
      %577 = vmatpush2.msra.mxu0 0.0
      %578 = vmatprep.subr.mxu0 0.0
      %579 = vmatpush2.msra.mxu0 0.0
      %580 = vmatprep.subr.mxu0 0.0
      %581 = vmatpush2.msra.mxu0 0.0
      %582 = vmatprep.subr.mxu0 0.0
      %583 = vmatpush2.msra.mxu0 0.0
      %584 = vmatprep.subr.mxu0 0.0
      %585 = vmatpush2.msra.mxu0 0.0
      %586 = vmatprep.mubr.f32.mxu0 0.0
      %587 = vmatmul.mubr.f32.gmra.mxu0 %v520
      %v588 = vpop.f32.mrf.mxu0
      %v589 = vadd.f32 0.0, %v588
      %v590 = vpop.f32.mrf.mxu0
      %591 = vdwg.mxu0
      %v592 = vadd.f32 %v516, %v589
      %v593 = vadd.f32 %v592, %v104
      %v594 = vxor.u32 %v593, 2147483648
      %v595 = vmul.f32 %v594, 1.442695
      %v596 = vpow.pop %v595
      %v597 = vadd.f32 %v596, 1.0
      %v598 = vrcp.pop %v597
      %v599 = vmul.f32 1.0, %v598
      %600 = vmatprep.subr.mxu0 0.0
      %601 = vmatpush1.msra.mxu0 0.0
      %602 = vmatprep.subr.mxu0 0.0
      %603 = vmatpush1.msra.mxu0 0.0
      %604 = vmatprep.subr.mxu0 0.0
      %605 = vmatpush1.msra.mxu0 0.0
      %606 = vmatprep.subr.mxu0 0.0
      %607 = vmatpush1.msra.mxu0 0.0
      %608 = vmatprep.subr.mxu0 0.0
      %609 = vmatpush1.msra.mxu0 0.0
      %610 = vmatprep.subr.mxu0 0.0
      %611 = vmatpush1.msra.mxu0 0.0
      %612 = vmatprep.subr.mxu0 0.0
      %613 = vmatpush1.msra.mxu0 0.0
      %614 = vmatprep.subr.mxu0 0.0
      %615 = vmatpush1.msra.mxu0 0.0
      %616 = vmatprep.subr.mxu0 0.0
      %617 = vmatpush1.msra.mxu0 0.0
      %618 = vmatprep.subr.mxu0 0.0
      %619 = vmatpush1.msra.mxu0 0.0
      %620 = vmatprep.subr.mxu0 0.0
      %621 = vmatpush1.msra.mxu0 0.0
      %622 = vmatprep.subr.mxu0 0.0
      %623 = vmatpush1.msra.mxu0 0.0
      %624 = vmatprep.subr.mxu0 0.0
      %625 = vmatpush1.msra.mxu0 %v51
      %626 = vmatprep.subr.mxu0 0.0
      %627 = vmatpush1.msra.mxu0 %v50
      %628 = vmatprep.subr.mxu0 0.0
      %629 = vmatpush1.msra.mxu0 %v49
      %630 = vmatprep.subr.mxu0 0.0
      %631 = vmatpush1.msra.mxu0 %v48
      %632 = vmatprep.subr.mxu0 0.0
      %633 = vmatpush2.msra.mxu0 0.0
      %634 = vmatprep.subr.mxu0 0.0
      %635 = vmatpush2.msra.mxu0 0.0
      %636 = vmatprep.subr.mxu0 0.0
      %637 = vmatpush2.msra.mxu0 0.0
      %638 = vmatprep.subr.mxu0 0.0
      %639 = vmatpush2.msra.mxu0 0.0
      %640 = vmatprep.subr.mxu0 0.0
      %641 = vmatpush2.msra.mxu0 0.0
      %642 = vmatprep.subr.mxu0 0.0
      %643 = vmatpush2.msra.mxu0 0.0
      %644 = vmatprep.subr.mxu0 0.0
      %645 = vmatpush2.msra.mxu0 0.0
      %646 = vmatprep.subr.mxu0 0.0
      %647 = vmatpush2.msra.mxu0 0.0
      %648 = vmatprep.subr.mxu0 0.0
      %649 = vmatpush2.msra.mxu0 0.0
      %650 = vmatprep.subr.mxu0 0.0
      %651 = vmatpush2.msra.mxu0 0.0
      %652 = vmatprep.subr.mxu0 0.0
      %653 = vmatpush2.msra.mxu0 0.0
      %654 = vmatprep.subr.mxu0 0.0
      %655 = vmatpush2.msra.mxu0 0.0
      %656 = vmatprep.subr.mxu0 0.0
      %657 = vmatpush2.msra.mxu0 0.0
      %658 = vmatprep.subr.mxu0 0.0
      %659 = vmatpush2.msra.mxu0 0.0
      %660 = vmatprep.subr.mxu0 0.0
      %661 = vmatpush2.msra.mxu0 0.0
      %662 = vmatprep.subr.mxu0 0.0
      %663 = vmatpush2.msra.mxu0 0.0
      %664 = vmatprep.mubr.f32.mxu0 0.0
      %665 = vmatmul.mubr.f32.gmra.mxu0 %v201
      %v666 = vpop.f32.mrf.mxu0
      %v667 = vadd.f32 0.0, %v666
      %v668 = vpop.f32.mrf.mxu0
      %669 = vdwg.mxu0
      %v671 = vrot.slane %v667, 7
      %v673 = vadd.f32 %v123, %v671
      %v675 = vsel %vm126, %v353, 0
      %677 = vmatprep.subr.mxu0 0.0
      %678 = vmatpush1.msra.mxu0 0.0
      %679 = vmatprep.subr.mxu0 0.0
      %680 = vmatpush1.msra.mxu0 0.0
      %681 = vmatprep.subr.mxu0 0.0
      %682 = vmatpush1.msra.mxu0 0.0
      %683 = vmatprep.subr.mxu0 0.0
      %684 = vmatpush1.msra.mxu0 0.0
      %685 = vmatprep.subr.mxu0 0.0
      %686 = vmatpush1.msra.mxu0 0.0
      %687 = vmatprep.subr.mxu0 0.0
      %688 = vmatpush1.msra.mxu0 0.0
      %689 = vmatprep.subr.mxu0 0.0
      %690 = vmatpush1.msra.mxu0 0.0
      %691 = vmatprep.subr.mxu0 0.0
      %692 = vmatpush1.msra.mxu0 0.0
      %693 = vmatprep.subr.mxu0 0.0
      %694 = vmatpush1.msra.mxu0 0.0
      %695 = vmatprep.subr.mxu0 0.0
      %696 = vmatpush1.msra.mxu0 0.0
      %697 = vmatprep.subr.mxu0 0.0
      %698 = vmatpush1.msra.mxu0 0.0
      %699 = vmatprep.subr.mxu0 0.0
      %700 = vmatpush1.msra.mxu0 0.0
      %701 = vmatprep.subr.mxu0 0.0
      %702 = vmatpush1.msra.mxu0 %v55
      %703 = vmatprep.subr.mxu0 0.0
      %704 = vmatpush1.msra.mxu0 %v54
      %705 = vmatprep.subr.mxu0 0.0
      %706 = vmatpush1.msra.mxu0 %v53
      %707 = vmatprep.subr.mxu0 0.0
      %708 = vmatpush1.msra.mxu0 %v52
      %709 = vmatprep.subr.mxu0 0.0
      %710 = vmatpush2.msra.mxu0 0.0
      %711 = vmatprep.subr.mxu0 0.0
      %712 = vmatpush2.msra.mxu0 0.0
      %713 = vmatprep.subr.mxu0 0.0
      %714 = vmatpush2.msra.mxu0 0.0
      %715 = vmatprep.subr.mxu0 0.0
      %716 = vmatpush2.msra.mxu0 0.0
      %717 = vmatprep.subr.mxu0 0.0
      %718 = vmatpush2.msra.mxu0 0.0
      %719 = vmatprep.subr.mxu0 0.0
      %720 = vmatpush2.msra.mxu0 0.0
      %721 = vmatprep.subr.mxu0 0.0
      %722 = vmatpush2.msra.mxu0 0.0
      %723 = vmatprep.subr.mxu0 0.0
      %724 = vmatpush2.msra.mxu0 0.0
      %725 = vmatprep.subr.mxu0 0.0
      %726 = vmatpush2.msra.mxu0 0.0
      %727 = vmatprep.subr.mxu0 0.0
      %728 = vmatpush2.msra.mxu0 0.0
      %729 = vmatprep.subr.mxu0 0.0
      %730 = vmatpush2.msra.mxu0 0.0
      %731 = vmatprep.subr.mxu0 0.0
      %732 = vmatpush2.msra.mxu0 0.0
      %733 = vmatprep.subr.mxu0 0.0
      %734 = vmatpush2.msra.mxu0 0.0
      %735 = vmatprep.subr.mxu0 0.0
      %736 = vmatpush2.msra.mxu0 0.0
      %737 = vmatprep.subr.mxu0 0.0
      %738 = vmatpush2.msra.mxu0 0.0
      %739 = vmatprep.subr.mxu0 0.0
      %740 = vmatpush2.msra.mxu0 0.0
      %741 = vmatprep.mubr.f32.mxu0 0.0
      %742 = vmatmul.mubr.f32.gmra.mxu0 %v675
      %v743 = vpop.f32.mrf.mxu0
      %v744 = vadd.f32 0.0, %v743
      %v745 = vpop.f32.mrf.mxu0
      %746 = vdwg.mxu0
      %747 = vmatprep.subr.mxu0 0.0
      %748 = vmatpush1.msra.mxu0 0.0
      %749 = vmatprep.subr.mxu0 0.0
      %750 = vmatpush1.msra.mxu0 0.0
      %751 = vmatprep.subr.mxu0 0.0
      %752 = vmatpush1.msra.mxu0 0.0
      %753 = vmatprep.subr.mxu0 0.0
      %754 = vmatpush1.msra.mxu0 0.0
      %755 = vmatprep.subr.mxu0 0.0
      %756 = vmatpush1.msra.mxu0 0.0
      %757 = vmatprep.subr.mxu0 0.0
      %758 = vmatpush1.msra.mxu0 0.0
      %759 = vmatprep.subr.mxu0 0.0
      %760 = vmatpush1.msra.mxu0 0.0
      %761 = vmatprep.subr.mxu0 0.0
      %762 = vmatpush1.msra.mxu0 0.0
      %763 = vmatprep.subr.mxu0 0.0
      %764 = vmatpush1.msra.mxu0 0.0
      %765 = vmatprep.subr.mxu0 0.0
      %766 = vmatpush1.msra.mxu0 0.0
      %767 = vmatprep.subr.mxu0 0.0
      %768 = vmatpush1.msra.mxu0 0.0
      %769 = vmatprep.subr.mxu0 0.0
      %770 = vmatpush1.msra.mxu0 0.0
      %771 = vmatprep.subr.mxu0 0.0
      %772 = vmatpush1.msra.mxu0 %v74
      %773 = vmatprep.subr.mxu0 0.0
      %774 = vmatpush1.msra.mxu0 %v73
      %775 = vmatprep.subr.mxu0 0.0
      %776 = vmatpush1.msra.mxu0 %v72
      %777 = vmatprep.subr.mxu0 0.0
      %778 = vmatpush1.msra.mxu0 %v71
      %779 = vmatprep.subr.mxu0 0.0
      %780 = vmatpush2.msra.mxu0 0.0
      %781 = vmatprep.subr.mxu0 0.0
      %782 = vmatpush2.msra.mxu0 0.0
      %783 = vmatprep.subr.mxu0 0.0
      %784 = vmatpush2.msra.mxu0 0.0
      %785 = vmatprep.subr.mxu0 0.0
      %786 = vmatpush2.msra.mxu0 0.0
      %787 = vmatprep.subr.mxu0 0.0
      %788 = vmatpush2.msra.mxu0 0.0
      %789 = vmatprep.subr.mxu0 0.0
      %790 = vmatpush2.msra.mxu0 0.0
      %791 = vmatprep.subr.mxu0 0.0
      %792 = vmatpush2.msra.mxu0 0.0
      %793 = vmatprep.subr.mxu0 0.0
      %794 = vmatpush2.msra.mxu0 0.0
      %795 = vmatprep.subr.mxu0 0.0
      %796 = vmatpush2.msra.mxu0 0.0
      %797 = vmatprep.subr.mxu0 0.0
      %798 = vmatpush2.msra.mxu0 0.0
      %799 = vmatprep.subr.mxu0 0.0
      %800 = vmatpush2.msra.mxu0 0.0
      %801 = vmatprep.subr.mxu0 0.0
      %802 = vmatpush2.msra.mxu0 0.0
      %803 = vmatprep.subr.mxu0 0.0
      %804 = vmatpush2.msra.mxu0 0.0
      %805 = vmatprep.subr.mxu0 0.0
      %806 = vmatpush2.msra.mxu0 0.0
      %807 = vmatprep.subr.mxu0 0.0
      %808 = vmatpush2.msra.mxu0 0.0
      %809 = vmatprep.subr.mxu0 0.0
      %810 = vmatpush2.msra.mxu0 0.0
      %811 = vmatprep.mubr.f32.mxu0 0.0
      %812 = vmatmul.mubr.f32.gmra.mxu0 %v675
      %v813 = vpop.f32.mrf.mxu0
      %v814 = vadd.f32 0.0, %v813
      %v815 = vpop.f32.mrf.mxu0
      %816 = vdwg.mxu0
      %v817 = vadd.f32 %v744, %v814
      %v818 = vadd.f32 %v817, %v100
      %v819 = vxor.u32 %v818, 2147483648
      %v820 = vmul.f32 %v819, 1.442695
      %v821 = vpow.pop %v820
      %v822 = vadd.f32 %v821, 1.0
      %v823 = vrcp.pop %v822
      %v824 = vmul.f32 1.0, %v823
      %826 = vrot.lane.b32.xlu0 %v448, 96
      %v827 = vpop.permute.xlu0 %826
      %v828 = vsel %vm126, %v827, 0
      %830 = vmatprep.subr.mxu0 0.0
      %831 = vmatpush1.msra.mxu0 0.0
      %832 = vmatprep.subr.mxu0 0.0
      %833 = vmatpush1.msra.mxu0 0.0
      %834 = vmatprep.subr.mxu0 0.0
      %835 = vmatpush1.msra.mxu0 0.0
      %836 = vmatprep.subr.mxu0 0.0
      %837 = vmatpush1.msra.mxu0 0.0
      %838 = vmatprep.subr.mxu0 0.0
      %839 = vmatpush1.msra.mxu0 0.0
      %840 = vmatprep.subr.mxu0 0.0
      %841 = vmatpush1.msra.mxu0 0.0
      %842 = vmatprep.subr.mxu0 0.0
      %843 = vmatpush1.msra.mxu0 0.0
      %844 = vmatprep.subr.mxu0 0.0
      %845 = vmatpush1.msra.mxu0 0.0
      %846 = vmatprep.subr.mxu0 0.0
      %847 = vmatpush1.msra.mxu0 0.0
      %848 = vmatprep.subr.mxu0 0.0
      %849 = vmatpush1.msra.mxu0 0.0
      %850 = vmatprep.subr.mxu0 0.0
      %851 = vmatpush1.msra.mxu0 0.0
      %852 = vmatprep.subr.mxu0 0.0
      %853 = vmatpush1.msra.mxu0 0.0
      %854 = vmatprep.subr.mxu0 0.0
      %855 = vmatpush1.msra.mxu0 %v79
      %856 = vmatprep.subr.mxu0 0.0
      %857 = vmatpush1.msra.mxu0 %v78
      %858 = vmatprep.subr.mxu0 0.0
      %859 = vmatpush1.msra.mxu0 %v77
      %860 = vmatprep.subr.mxu0 0.0
      %861 = vmatpush1.msra.mxu0 %v76
      %862 = vmatprep.subr.mxu0 0.0
      %863 = vmatpush2.msra.mxu0 0.0
      %864 = vmatprep.subr.mxu0 0.0
      %865 = vmatpush2.msra.mxu0 0.0
      %866 = vmatprep.subr.mxu0 0.0
      %867 = vmatpush2.msra.mxu0 0.0
      %868 = vmatprep.subr.mxu0 0.0
      %869 = vmatpush2.msra.mxu0 0.0
      %870 = vmatprep.subr.mxu0 0.0
      %871 = vmatpush2.msra.mxu0 0.0
      %872 = vmatprep.subr.mxu0 0.0
      %873 = vmatpush2.msra.mxu0 0.0
      %874 = vmatprep.subr.mxu0 0.0
      %875 = vmatpush2.msra.mxu0 0.0
      %876 = vmatprep.subr.mxu0 0.0
      %877 = vmatpush2.msra.mxu0 0.0
      %878 = vmatprep.subr.mxu0 0.0
      %879 = vmatpush2.msra.mxu0 0.0
      %880 = vmatprep.subr.mxu0 0.0
      %881 = vmatpush2.msra.mxu0 0.0
      %882 = vmatprep.subr.mxu0 0.0
      %883 = vmatpush2.msra.mxu0 0.0
      %884 = vmatprep.subr.mxu0 0.0
      %885 = vmatpush2.msra.mxu0 0.0
      %886 = vmatprep.subr.mxu0 0.0
      %887 = vmatpush2.msra.mxu0 0.0
      %888 = vmatprep.subr.mxu0 0.0
      %889 = vmatpush2.msra.mxu0 0.0
      %890 = vmatprep.subr.mxu0 0.0
      %891 = vmatpush2.msra.mxu0 0.0
      %892 = vmatprep.subr.mxu0 0.0
      %893 = vmatpush2.msra.mxu0 0.0
      %894 = vmatprep.mubr.f32.mxu0 0.0
      %895 = vmatmul.mubr.f32.gmra.mxu0 %v828
      %v896 = vpop.f32.mrf.mxu0
      %v897 = vadd.f32 0.0, %v896
      %v898 = vpop.f32.mrf.mxu0
      %899 = vdwg.mxu0
      %904 = vrot.lane.b32.xlu0 %v52, 96
      %v905 = vpop.permute.xlu0 %904
      %906 = vrot.lane.b32.xlu0 %v53, 96
      %v907 = vpop.permute.xlu0 %906
      %908 = vrot.lane.b32.xlu0 %v54, 96
      %v909 = vpop.permute.xlu0 %908
      %910 = vrot.lane.b32.xlu0 %v55, 96
      %v911 = vpop.permute.xlu0 %910
      %v917 = vsel %vm126, %v824, 0
      %919 = vmatprep.subr.mxu0 0.0
      %920 = vmatpush1.msra.mxu0 0.0
      %921 = vmatprep.subr.mxu0 0.0
      %922 = vmatpush1.msra.mxu0 0.0
      %923 = vmatprep.subr.mxu0 0.0
      %924 = vmatpush1.msra.mxu0 0.0
      %925 = vmatprep.subr.mxu0 0.0
      %926 = vmatpush1.msra.mxu0 0.0
      %927 = vmatprep.subr.mxu0 0.0
      %928 = vmatpush1.msra.mxu0 0.0
      %929 = vmatprep.subr.mxu0 0.0
      %930 = vmatpush1.msra.mxu0 0.0
      %931 = vmatprep.subr.mxu0 0.0
      %932 = vmatpush1.msra.mxu0 0.0
      %933 = vmatprep.subr.mxu0 0.0
      %934 = vmatpush1.msra.mxu0 0.0
      %935 = vmatprep.subr.mxu0 0.0
      %936 = vmatpush1.msra.mxu0 0.0
      %937 = vmatprep.subr.mxu0 0.0
      %938 = vmatpush1.msra.mxu0 0.0
      %939 = vmatprep.subr.mxu0 0.0
      %940 = vmatpush1.msra.mxu0 0.0
      %941 = vmatprep.subr.mxu0 0.0
      %942 = vmatpush1.msra.mxu0 0.0
      %943 = vmatprep.subr.mxu0 0.0
      %944 = vmatpush1.msra.mxu0 %v911
      %945 = vmatprep.subr.mxu0 0.0
      %946 = vmatpush1.msra.mxu0 %v909
      %947 = vmatprep.subr.mxu0 0.0
      %948 = vmatpush1.msra.mxu0 %v907
      %949 = vmatprep.subr.mxu0 0.0
      %950 = vmatpush1.msra.mxu0 %v905
      %951 = vmatprep.subr.mxu0 0.0
      %952 = vmatpush2.msra.mxu0 0.0
      %953 = vmatprep.subr.mxu0 0.0
      %954 = vmatpush2.msra.mxu0 0.0
      %955 = vmatprep.subr.mxu0 0.0
      %956 = vmatpush2.msra.mxu0 0.0
      %957 = vmatprep.subr.mxu0 0.0
      %958 = vmatpush2.msra.mxu0 0.0
      %959 = vmatprep.subr.mxu0 0.0
      %960 = vmatpush2.msra.mxu0 0.0
      %961 = vmatprep.subr.mxu0 0.0
      %962 = vmatpush2.msra.mxu0 0.0
      %963 = vmatprep.subr.mxu0 0.0
      %964 = vmatpush2.msra.mxu0 0.0
      %965 = vmatprep.subr.mxu0 0.0
      %966 = vmatpush2.msra.mxu0 0.0
      %967 = vmatprep.subr.mxu0 0.0
      %968 = vmatpush2.msra.mxu0 0.0
      %969 = vmatprep.subr.mxu0 0.0
      %970 = vmatpush2.msra.mxu0 0.0
      %971 = vmatprep.subr.mxu0 0.0
      %972 = vmatpush2.msra.mxu0 0.0
      %973 = vmatprep.subr.mxu0 0.0
      %974 = vmatpush2.msra.mxu0 0.0
      %975 = vmatprep.subr.mxu0 0.0
      %976 = vmatpush2.msra.mxu0 0.0
      %977 = vmatprep.subr.mxu0 0.0
      %978 = vmatpush2.msra.mxu0 0.0
      %979 = vmatprep.subr.mxu0 0.0
      %980 = vmatpush2.msra.mxu0 0.0
      %981 = vmatprep.subr.mxu0 0.0
      %982 = vmatpush2.msra.mxu0 0.0
      %983 = vmatprep.mubr.f32.mxu0 0.0
      %984 = vmatmul.mubr.f32.gmra.mxu0 %v917
      %v985 = vpop.f32.mrf.mxu0
      %v986 = vadd.f32 %v897, %v985
      %v987 = vpop.f32.mrf.mxu0
      %988 = vdwg.mxu0
      %v989 = vadd.f32 %v986, %v102
      %v990 = vxor.u32 %v989, 2147483648
      %v991 = vmul.f32 %v990, 1.442695
      %v992 = vpow.pop %v991
      %v993 = vadd.f32 %v992, 1.0
      %v994 = vrcp.pop %v993
      %v995 = vmul.f32 1.0, %v994
      %996 = vmatprep.subr.mxu0 0.0
      %997 = vmatpush1.msra.mxu0 0.0
      %998 = vmatprep.subr.mxu0 0.0
      %999 = vmatpush1.msra.mxu0 0.0
      %1000 = vmatprep.subr.mxu0 0.0
      %1001 = vmatpush1.msra.mxu0 0.0
      %1002 = vmatprep.subr.mxu0 0.0
      %1003 = vmatpush1.msra.mxu0 0.0
      %1004 = vmatprep.subr.mxu0 0.0
      %1005 = vmatpush1.msra.mxu0 0.0
      %1006 = vmatprep.subr.mxu0 0.0
      %1007 = vmatpush1.msra.mxu0 0.0
      %1008 = vmatprep.subr.mxu0 0.0
      %1009 = vmatpush1.msra.mxu0 0.0
      %1010 = vmatprep.subr.mxu0 0.0
      %1011 = vmatpush1.msra.mxu0 0.0
      %1012 = vmatprep.subr.mxu0 0.0
      %1013 = vmatpush1.msra.mxu0 0.0
      %1014 = vmatprep.subr.mxu0 0.0
      %1015 = vmatpush1.msra.mxu0 0.0
      %1016 = vmatprep.subr.mxu0 0.0
      %1017 = vmatpush1.msra.mxu0 0.0
      %1018 = vmatprep.subr.mxu0 0.0
      %1019 = vmatpush1.msra.mxu0 0.0
      %1020 = vmatprep.subr.mxu0 0.0
      %1021 = vmatpush1.msra.mxu0 %v70
      %1022 = vmatprep.subr.mxu0 0.0
      %1023 = vmatpush1.msra.mxu0 %v69
      %1024 = vmatprep.subr.mxu0 0.0
      %1025 = vmatpush1.msra.mxu0 %v68
      %1026 = vmatprep.subr.mxu0 0.0
      %1027 = vmatpush1.msra.mxu0 %v67
      %1028 = vmatprep.subr.mxu0 0.0
      %1029 = vmatpush2.msra.mxu0 0.0
      %1030 = vmatprep.subr.mxu0 0.0
      %1031 = vmatpush2.msra.mxu0 0.0
      %1032 = vmatprep.subr.mxu0 0.0
      %1033 = vmatpush2.msra.mxu0 0.0
      %1034 = vmatprep.subr.mxu0 0.0
      %1035 = vmatpush2.msra.mxu0 0.0
      %1036 = vmatprep.subr.mxu0 0.0
      %1037 = vmatpush2.msra.mxu0 0.0
      %1038 = vmatprep.subr.mxu0 0.0
      %1039 = vmatpush2.msra.mxu0 0.0
      %1040 = vmatprep.subr.mxu0 0.0
      %1041 = vmatpush2.msra.mxu0 0.0
      %1042 = vmatprep.subr.mxu0 0.0
      %1043 = vmatpush2.msra.mxu0 0.0
      %1044 = vmatprep.subr.mxu0 0.0
      %1045 = vmatpush2.msra.mxu0 0.0
      %1046 = vmatprep.subr.mxu0 0.0
      %1047 = vmatpush2.msra.mxu0 0.0
      %1048 = vmatprep.subr.mxu0 0.0
      %1049 = vmatpush2.msra.mxu0 0.0
      %1050 = vmatprep.subr.mxu0 0.0
      %1051 = vmatpush2.msra.mxu0 0.0
      %1052 = vmatprep.subr.mxu0 0.0
      %1053 = vmatpush2.msra.mxu0 0.0
      %1054 = vmatprep.subr.mxu0 0.0
      %1055 = vmatpush2.msra.mxu0 0.0
      %1056 = vmatprep.subr.mxu0 0.0
      %1057 = vmatpush2.msra.mxu0 0.0
      %1058 = vmatprep.subr.mxu0 0.0
      %1059 = vmatpush2.msra.mxu0 0.0
      %1060 = vmatprep.mubr.f32.mxu0 0.0
      %1061 = vmatmul.mubr.f32.gmra.mxu0 %v917
      %v1062 = vpop.f32.mrf.mxu0
      %v1063 = vadd.f32 0.0, %v1062
      %v1064 = vpop.f32.mrf.mxu0
      %1065 = vdwg.mxu0
      %v1067 = vsel %vm126, %v599, 0
      %1069 = vmatprep.subr.mxu0 0.0
      %1070 = vmatpush1.msra.mxu0 0.0
      %1071 = vmatprep.subr.mxu0 0.0
      %1072 = vmatpush1.msra.mxu0 0.0
      %1073 = vmatprep.subr.mxu0 0.0
      %1074 = vmatpush1.msra.mxu0 0.0
      %1075 = vmatprep.subr.mxu0 0.0
      %1076 = vmatpush1.msra.mxu0 0.0
      %1077 = vmatprep.subr.mxu0 0.0
      %1078 = vmatpush1.msra.mxu0 0.0
      %1079 = vmatprep.subr.mxu0 0.0
      %1080 = vmatpush1.msra.mxu0 0.0
      %1081 = vmatprep.subr.mxu0 0.0
      %1082 = vmatpush1.msra.mxu0 0.0
      %1083 = vmatprep.subr.mxu0 0.0
      %1084 = vmatpush1.msra.mxu0 0.0
      %1085 = vmatprep.subr.mxu0 0.0
      %1086 = vmatpush1.msra.mxu0 0.0
      %1087 = vmatprep.subr.mxu0 0.0
      %1088 = vmatpush1.msra.mxu0 0.0
      %1089 = vmatprep.subr.mxu0 0.0
      %1090 = vmatpush1.msra.mxu0 0.0
      %1091 = vmatprep.subr.mxu0 0.0
      %1092 = vmatpush1.msra.mxu0 0.0
      %1093 = vmatprep.subr.mxu0 0.0
      %1094 = vmatpush1.msra.mxu0 %v99
      %1095 = vmatprep.subr.mxu0 0.0
      %1096 = vmatpush1.msra.mxu0 %v98
      %1097 = vmatprep.subr.mxu0 0.0
      %1098 = vmatpush1.msra.mxu0 %v97
      %1099 = vmatprep.subr.mxu0 0.0
      %1100 = vmatpush1.msra.mxu0 %v96
      %1101 = vmatprep.subr.mxu0 0.0
      %1102 = vmatpush2.msra.mxu0 0.0
      %1103 = vmatprep.subr.mxu0 0.0
      %1104 = vmatpush2.msra.mxu0 0.0
      %1105 = vmatprep.subr.mxu0 0.0
      %1106 = vmatpush2.msra.mxu0 0.0
      %1107 = vmatprep.subr.mxu0 0.0
      %1108 = vmatpush2.msra.mxu0 0.0
      %1109 = vmatprep.subr.mxu0 0.0
      %1110 = vmatpush2.msra.mxu0 0.0
      %1111 = vmatprep.subr.mxu0 0.0
      %1112 = vmatpush2.msra.mxu0 0.0
      %1113 = vmatprep.subr.mxu0 0.0
      %1114 = vmatpush2.msra.mxu0 0.0
      %1115 = vmatprep.subr.mxu0 0.0
      %1116 = vmatpush2.msra.mxu0 0.0
      %1117 = vmatprep.subr.mxu0 0.0
      %1118 = vmatpush2.msra.mxu0 0.0
      %1119 = vmatprep.subr.mxu0 0.0
      %1120 = vmatpush2.msra.mxu0 0.0
      %1121 = vmatprep.subr.mxu0 0.0
      %1122 = vmatpush2.msra.mxu0 0.0
      %1123 = vmatprep.subr.mxu0 0.0
      %1124 = vmatpush2.msra.mxu0 0.0
      %1125 = vmatprep.subr.mxu0 0.0
      %1126 = vmatpush2.msra.mxu0 0.0
      %1127 = vmatprep.subr.mxu0 0.0
      %1128 = vmatpush2.msra.mxu0 0.0
      %1129 = vmatprep.subr.mxu0 0.0
      %1130 = vmatpush2.msra.mxu0 0.0
      %1131 = vmatprep.subr.mxu0 0.0
      %1132 = vmatpush2.msra.mxu0 0.0
      %1133 = vmatprep.mubr.f32.mxu0 0.0
      %1134 = vmatmul.mubr.f32.gmra.mxu0 %v1067
      %v1135 = vpop.f32.mrf.mxu0
      %v1136 = vadd.f32 0.0, %v1135
      %v1137 = vpop.f32.mrf.mxu0
      %1138 = vdwg.mxu0
      %v1139 = vadd.f32 %v1063, %v1136
      %v1140 = vadd.f32 %v1139, %v110
      %v1141 = vxor.u32 %v1140, 2147483648
      %v1142 = vmul.f32 %v1141, 1.442695
      %v1143 = vpow.pop %v1142
      %v1144 = vadd.f32 %v1143, 1.0
      %v1145 = vrcp.pop %v1144
      %v1146 = vmul.f32 1.0, %v1145
      %v1148 = vrot.slane %v673, 1
      %v1149 = vsel %vm126, %v1148, 0
      %1151 = vmatprep.subr.mxu0 0.0
      %1152 = vmatpush1.msra.mxu0 0.0
      %1153 = vmatprep.subr.mxu0 0.0
      %1154 = vmatpush1.msra.mxu0 0.0
      %1155 = vmatprep.subr.mxu0 0.0
      %1156 = vmatpush1.msra.mxu0 0.0
      %1157 = vmatprep.subr.mxu0 0.0
      %1158 = vmatpush1.msra.mxu0 0.0
      %1159 = vmatprep.subr.mxu0 0.0
      %1160 = vmatpush1.msra.mxu0 0.0
      %1161 = vmatprep.subr.mxu0 0.0
      %1162 = vmatpush1.msra.mxu0 0.0
      %1163 = vmatprep.subr.mxu0 0.0
      %1164 = vmatpush1.msra.mxu0 0.0
      %1165 = vmatprep.subr.mxu0 0.0
      %1166 = vmatpush1.msra.mxu0 0.0
      %1167 = vmatprep.subr.mxu0 0.0
      %1168 = vmatpush1.msra.mxu0 0.0
      %1169 = vmatprep.subr.mxu0 0.0
      %1170 = vmatpush1.msra.mxu0 0.0
      %1171 = vmatprep.subr.mxu0 0.0
      %1172 = vmatpush1.msra.mxu0 0.0
      %1173 = vmatprep.subr.mxu0 0.0
      %1174 = vmatpush1.msra.mxu0 0.0
      %1175 = vmatprep.subr.mxu0 0.0
      %1176 = vmatpush1.msra.mxu0 %v51
      %1177 = vmatprep.subr.mxu0 0.0
      %1178 = vmatpush1.msra.mxu0 %v50
      %1179 = vmatprep.subr.mxu0 0.0
      %1180 = vmatpush1.msra.mxu0 %v49
      %1181 = vmatprep.subr.mxu0 0.0
      %1182 = vmatpush1.msra.mxu0 %v48
      %1183 = vmatprep.subr.mxu0 0.0
      %1184 = vmatpush2.msra.mxu0 0.0
      %1185 = vmatprep.subr.mxu0 0.0
      %1186 = vmatpush2.msra.mxu0 0.0
      %1187 = vmatprep.subr.mxu0 0.0
      %1188 = vmatpush2.msra.mxu0 0.0
      %1189 = vmatprep.subr.mxu0 0.0
      %1190 = vmatpush2.msra.mxu0 0.0
      %1191 = vmatprep.subr.mxu0 0.0
      %1192 = vmatpush2.msra.mxu0 0.0
      %1193 = vmatprep.subr.mxu0 0.0
      %1194 = vmatpush2.msra.mxu0 0.0
      %1195 = vmatprep.subr.mxu0 0.0
      %1196 = vmatpush2.msra.mxu0 0.0
      %1197 = vmatprep.subr.mxu0 0.0
      %1198 = vmatpush2.msra.mxu0 0.0
      %1199 = vmatprep.subr.mxu0 0.0
      %1200 = vmatpush2.msra.mxu0 0.0
      %1201 = vmatprep.subr.mxu0 0.0
      %1202 = vmatpush2.msra.mxu0 0.0
      %1203 = vmatprep.subr.mxu0 0.0
      %1204 = vmatpush2.msra.mxu0 0.0
      %1205 = vmatprep.subr.mxu0 0.0
      %1206 = vmatpush2.msra.mxu0 0.0
      %1207 = vmatprep.subr.mxu0 0.0
      %1208 = vmatpush2.msra.mxu0 0.0
      %1209 = vmatprep.subr.mxu0 0.0
      %1210 = vmatpush2.msra.mxu0 0.0
      %1211 = vmatprep.subr.mxu0 0.0
      %1212 = vmatpush2.msra.mxu0 0.0
      %1213 = vmatprep.subr.mxu0 0.0
      %1214 = vmatpush2.msra.mxu0 0.0
      %1215 = vmatprep.mubr.f32.mxu0 0.0
      %1216 = vmatmul.mubr.f32.gmra.mxu0 %v1149
      %v1217 = vpop.f32.mrf.mxu0
      %v1218 = vadd.f32 0.0, %v1217
      %v1219 = vpop.f32.mrf.mxu0
      %1220 = vdwg.mxu0
      %v1222 = vrot.slane %v1218, 6
      %v1224 = vadd.f32 %v123, %v1222
      %v1226 = vsel %vm126, %v995, 0
      %1228 = vmatprep.subr.mxu0 0.0
      %1229 = vmatpush1.msra.mxu0 0.0
      %1230 = vmatprep.subr.mxu0 0.0
      %1231 = vmatpush1.msra.mxu0 0.0
      %1232 = vmatprep.subr.mxu0 0.0
      %1233 = vmatpush1.msra.mxu0 0.0
      %1234 = vmatprep.subr.mxu0 0.0
      %1235 = vmatpush1.msra.mxu0 0.0
      %1236 = vmatprep.subr.mxu0 0.0
      %1237 = vmatpush1.msra.mxu0 0.0
      %1238 = vmatprep.subr.mxu0 0.0
      %1239 = vmatpush1.msra.mxu0 0.0
      %1240 = vmatprep.subr.mxu0 0.0
      %1241 = vmatpush1.msra.mxu0 0.0
      %1242 = vmatprep.subr.mxu0 0.0
      %1243 = vmatpush1.msra.mxu0 0.0
      %1244 = vmatprep.subr.mxu0 0.0
      %1245 = vmatpush1.msra.mxu0 0.0
      %1246 = vmatprep.subr.mxu0 0.0
      %1247 = vmatpush1.msra.mxu0 0.0
      %1248 = vmatprep.subr.mxu0 0.0
      %1249 = vmatpush1.msra.mxu0 0.0
      %1250 = vmatprep.subr.mxu0 0.0
      %1251 = vmatpush1.msra.mxu0 0.0
      %1252 = vmatprep.subr.mxu0 0.0
      %1253 = vmatpush1.msra.mxu0 %v65
      %1254 = vmatprep.subr.mxu0 0.0
      %1255 = vmatpush1.msra.mxu0 %v64
      %1256 = vmatprep.subr.mxu0 0.0
      %1257 = vmatpush1.msra.mxu0 %v63
      %1258 = vmatprep.subr.mxu0 0.0
      %1259 = vmatpush1.msra.mxu0 %v62
      %1260 = vmatprep.subr.mxu0 0.0
      %1261 = vmatpush2.msra.mxu0 0.0
      %1262 = vmatprep.subr.mxu0 0.0
      %1263 = vmatpush2.msra.mxu0 0.0
      %1264 = vmatprep.subr.mxu0 0.0
      %1265 = vmatpush2.msra.mxu0 0.0
      %1266 = vmatprep.subr.mxu0 0.0
      %1267 = vmatpush2.msra.mxu0 0.0
      %1268 = vmatprep.subr.mxu0 0.0
      %1269 = vmatpush2.msra.mxu0 0.0
      %1270 = vmatprep.subr.mxu0 0.0
      %1271 = vmatpush2.msra.mxu0 0.0
      %1272 = vmatprep.subr.mxu0 0.0
      %1273 = vmatpush2.msra.mxu0 0.0
      %1274 = vmatprep.subr.mxu0 0.0
      %1275 = vmatpush2.msra.mxu0 0.0
      %1276 = vmatprep.subr.mxu0 0.0
      %1277 = vmatpush2.msra.mxu0 0.0
      %1278 = vmatprep.subr.mxu0 0.0
      %1279 = vmatpush2.msra.mxu0 0.0
      %1280 = vmatprep.subr.mxu0 0.0
      %1281 = vmatpush2.msra.mxu0 0.0
      %1282 = vmatprep.subr.mxu0 0.0
      %1283 = vmatpush2.msra.mxu0 0.0
      %1284 = vmatprep.subr.mxu0 0.0
      %1285 = vmatpush2.msra.mxu0 0.0
      %1286 = vmatprep.subr.mxu0 0.0
      %1287 = vmatpush2.msra.mxu0 0.0
      %1288 = vmatprep.subr.mxu0 0.0
      %1289 = vmatpush2.msra.mxu0 0.0
      %1290 = vmatprep.subr.mxu0 0.0
      %1291 = vmatpush2.msra.mxu0 0.0
      %1292 = vmatprep.mubr.f32.mxu0 0.0
      %1293 = vmatmul.mubr.f32.gmra.mxu0 %v1226
      %v1294 = vpop.f32.mrf.mxu0
      %v1295 = vadd.f32 0.0, %v1294
      %v1296 = vpop.f32.mrf.mxu0
      %1297 = vdwg.mxu0
      %1298 = vmatprep.subr.mxu0 0.0
      %1299 = vmatpush1.msra.mxu0 0.0
      %1300 = vmatprep.subr.mxu0 0.0
      %1301 = vmatpush1.msra.mxu0 0.0
      %1302 = vmatprep.subr.mxu0 0.0
      %1303 = vmatpush1.msra.mxu0 0.0
      %1304 = vmatprep.subr.mxu0 0.0
      %1305 = vmatpush1.msra.mxu0 0.0
      %1306 = vmatprep.subr.mxu0 0.0
      %1307 = vmatpush1.msra.mxu0 0.0
      %1308 = vmatprep.subr.mxu0 0.0
      %1309 = vmatpush1.msra.mxu0 0.0
      %1310 = vmatprep.subr.mxu0 0.0
      %1311 = vmatpush1.msra.mxu0 0.0
      %1312 = vmatprep.subr.mxu0 0.0
      %1313 = vmatpush1.msra.mxu0 0.0
      %1314 = vmatprep.subr.mxu0 0.0
      %1315 = vmatpush1.msra.mxu0 0.0
      %1316 = vmatprep.subr.mxu0 0.0
      %1317 = vmatpush1.msra.mxu0 0.0
      %1318 = vmatprep.subr.mxu0 0.0
      %1319 = vmatpush1.msra.mxu0 0.0
      %1320 = vmatprep.subr.mxu0 0.0
      %1321 = vmatpush1.msra.mxu0 0.0
      %1322 = vmatprep.subr.mxu0 0.0
      %1323 = vmatpush1.msra.mxu0 %v89
      %1324 = vmatprep.subr.mxu0 0.0
      %1325 = vmatpush1.msra.mxu0 %v88
      %1326 = vmatprep.subr.mxu0 0.0
      %1327 = vmatpush1.msra.mxu0 %v87
      %1328 = vmatprep.subr.mxu0 0.0
      %1329 = vmatpush1.msra.mxu0 %v86
      %1330 = vmatprep.subr.mxu0 0.0
      %1331 = vmatpush2.msra.mxu0 0.0
      %1332 = vmatprep.subr.mxu0 0.0
      %1333 = vmatpush2.msra.mxu0 0.0
      %1334 = vmatprep.subr.mxu0 0.0
      %1335 = vmatpush2.msra.mxu0 0.0
      %1336 = vmatprep.subr.mxu0 0.0
      %1337 = vmatpush2.msra.mxu0 0.0
      %1338 = vmatprep.subr.mxu0 0.0
      %1339 = vmatpush2.msra.mxu0 0.0
      %1340 = vmatprep.subr.mxu0 0.0
      %1341 = vmatpush2.msra.mxu0 0.0
      %1342 = vmatprep.subr.mxu0 0.0
      %1343 = vmatpush2.msra.mxu0 0.0
      %1344 = vmatprep.subr.mxu0 0.0
      %1345 = vmatpush2.msra.mxu0 0.0
      %1346 = vmatprep.subr.mxu0 0.0
      %1347 = vmatpush2.msra.mxu0 0.0
      %1348 = vmatprep.subr.mxu0 0.0
      %1349 = vmatpush2.msra.mxu0 0.0
      %1350 = vmatprep.subr.mxu0 0.0
      %1351 = vmatpush2.msra.mxu0 0.0
      %1352 = vmatprep.subr.mxu0 0.0
      %1353 = vmatpush2.msra.mxu0 0.0
      %1354 = vmatprep.subr.mxu0 0.0
      %1355 = vmatpush2.msra.mxu0 0.0
      %1356 = vmatprep.subr.mxu0 0.0
      %1357 = vmatpush2.msra.mxu0 0.0
      %1358 = vmatprep.subr.mxu0 0.0
      %1359 = vmatpush2.msra.mxu0 0.0
      %1360 = vmatprep.subr.mxu0 0.0
      %1361 = vmatpush2.msra.mxu0 0.0
      %1362 = vmatprep.mubr.f32.mxu0 0.0
      %1363 = vmatmul.mubr.f32.gmra.mxu0 %v917
      %v1364 = vpop.f32.mrf.mxu0
      %v1365 = vadd.f32 0.0, %v1364
      %v1366 = vpop.f32.mrf.mxu0
      %1367 = vdwg.mxu0
      %v1368 = vadd.f32 %v1295, %v1365
      %v1369 = vadd.f32 %v1368, %v106
      %v1370 = vxor.u32 %v1369, 2147483648
      %v1371 = vmul.f32 %v1370, 1.442695
      %v1372 = vpow.pop %v1371
      %v1373 = vadd.f32 %v1372, 1.0
      %v1374 = vrcp.pop %v1373
      %v1375 = vmul.f32 1.0, %v1374
      %1376 = vmatprep.subr.mxu0 0.0
      %1377 = vmatpush1.msra.mxu0 0.0
      %1378 = vmatprep.subr.mxu0 0.0
      %1379 = vmatpush1.msra.mxu0 0.0
      %1380 = vmatprep.subr.mxu0 0.0
      %1381 = vmatpush1.msra.mxu0 0.0
      %1382 = vmatprep.subr.mxu0 0.0
      %1383 = vmatpush1.msra.mxu0 0.0
      %1384 = vmatprep.subr.mxu0 0.0
      %1385 = vmatpush1.msra.mxu0 0.0
      %1386 = vmatprep.subr.mxu0 0.0
      %1387 = vmatpush1.msra.mxu0 0.0
      %1388 = vmatprep.subr.mxu0 0.0
      %1389 = vmatpush1.msra.mxu0 0.0
      %1390 = vmatprep.subr.mxu0 0.0
      %1391 = vmatpush1.msra.mxu0 0.0
      %1392 = vmatprep.subr.mxu0 0.0
      %1393 = vmatpush1.msra.mxu0 0.0
      %1394 = vmatprep.subr.mxu0 0.0
      %1395 = vmatpush1.msra.mxu0 0.0
      %1396 = vmatprep.subr.mxu0 0.0
      %1397 = vmatpush1.msra.mxu0 0.0
      %1398 = vmatprep.subr.mxu0 0.0
      %1399 = vmatpush1.msra.mxu0 0.0
      %1400 = vmatprep.subr.mxu0 0.0
      %1401 = vmatpush1.msra.mxu0 %v94
      %1402 = vmatprep.subr.mxu0 0.0
      %1403 = vmatpush1.msra.mxu0 %v93
      %1404 = vmatprep.subr.mxu0 0.0
      %1405 = vmatpush1.msra.mxu0 %v92
      %1406 = vmatprep.subr.mxu0 0.0
      %1407 = vmatpush1.msra.mxu0 %v91
      %1408 = vmatprep.subr.mxu0 0.0
      %1409 = vmatpush2.msra.mxu0 0.0
      %1410 = vmatprep.subr.mxu0 0.0
      %1411 = vmatpush2.msra.mxu0 0.0
      %1412 = vmatprep.subr.mxu0 0.0
      %1413 = vmatpush2.msra.mxu0 0.0
      %1414 = vmatprep.subr.mxu0 0.0
      %1415 = vmatpush2.msra.mxu0 0.0
      %1416 = vmatprep.subr.mxu0 0.0
      %1417 = vmatpush2.msra.mxu0 0.0
      %1418 = vmatprep.subr.mxu0 0.0
      %1419 = vmatpush2.msra.mxu0 0.0
      %1420 = vmatprep.subr.mxu0 0.0
      %1421 = vmatpush2.msra.mxu0 0.0
      %1422 = vmatprep.subr.mxu0 0.0
      %1423 = vmatpush2.msra.mxu0 0.0
      %1424 = vmatprep.subr.mxu0 0.0
      %1425 = vmatpush2.msra.mxu0 0.0
      %1426 = vmatprep.subr.mxu0 0.0
      %1427 = vmatpush2.msra.mxu0 0.0
      %1428 = vmatprep.subr.mxu0 0.0
      %1429 = vmatpush2.msra.mxu0 0.0
      %1430 = vmatprep.subr.mxu0 0.0
      %1431 = vmatpush2.msra.mxu0 0.0
      %1432 = vmatprep.subr.mxu0 0.0
      %1433 = vmatpush2.msra.mxu0 0.0
      %1434 = vmatprep.subr.mxu0 0.0
      %1435 = vmatpush2.msra.mxu0 0.0
      %1436 = vmatprep.subr.mxu0 0.0
      %1437 = vmatpush2.msra.mxu0 0.0
      %1438 = vmatprep.subr.mxu0 0.0
      %1439 = vmatpush2.msra.mxu0 0.0
      %1440 = vmatprep.mubr.f32.mxu0 0.0
      %1441 = vmatmul.mubr.f32.gmra.mxu0 %v1226
      %v1442 = vpop.f32.mrf.mxu0
      %v1443 = vadd.f32 0.0, %v1442
      %v1444 = vpop.f32.mrf.mxu0
      %1445 = vdwg.mxu0
      %1447 = vrot.lane.b32.xlu0 %v1443, 32
      %v1448 = vpop.permute.xlu0 %1447
      %v1450 = vadd.f32 %v1295, %v1448
      %v1452 = vlaneseq
      %v1453 = vshrl.u32 %v1452, 7
      %v1454 = vsub.s32 0, %v1453
      %v1455 = vrot.slane %v108, %v1454
      %1456 = vrot.lane.b32.xlu0 %v1455, 32
      %v1457 = vpop.permute.xlu0 %1456
      %v1459 = vadd.f32 %v1450, %v1457
      %v1460 = vxor.u32 %v1459, 2147483648
      %v1461 = vmul.f32 %v1460, 1.442695
      %v1462 = vpow.pop %v1461
      %v1463 = vadd.f32 %v1462, 1.0
      %v1464 = vrcp.pop %v1463
      %v1465 = vmul.f32 1.0, %v1464
      %v1467 = vrot.slane %v1224, 2
      %v1468 = vsel %vm126, %v1467, 0
      %1470 = vmatprep.subr.mxu0 0.0
      %1471 = vmatpush1.msra.mxu0 0.0
      %1472 = vmatprep.subr.mxu0 0.0
      %1473 = vmatpush1.msra.mxu0 0.0
      %1474 = vmatprep.subr.mxu0 0.0
      %1475 = vmatpush1.msra.mxu0 0.0
      %1476 = vmatprep.subr.mxu0 0.0
      %1477 = vmatpush1.msra.mxu0 0.0
      %1478 = vmatprep.subr.mxu0 0.0
      %1479 = vmatpush1.msra.mxu0 0.0
      %1480 = vmatprep.subr.mxu0 0.0
      %1481 = vmatpush1.msra.mxu0 0.0
      %1482 = vmatprep.subr.mxu0 0.0
      %1483 = vmatpush1.msra.mxu0 0.0
      %1484 = vmatprep.subr.mxu0 0.0
      %1485 = vmatpush1.msra.mxu0 0.0
      %1486 = vmatprep.subr.mxu0 0.0
      %1487 = vmatpush1.msra.mxu0 0.0
      %1488 = vmatprep.subr.mxu0 0.0
      %1489 = vmatpush1.msra.mxu0 0.0
      %1490 = vmatprep.subr.mxu0 0.0
      %1491 = vmatpush1.msra.mxu0 0.0
      %1492 = vmatprep.subr.mxu0 0.0
      %1493 = vmatpush1.msra.mxu0 0.0
      %1494 = vmatprep.subr.mxu0 0.0
      %1495 = vmatpush1.msra.mxu0 %v51
      %1496 = vmatprep.subr.mxu0 0.0
      %1497 = vmatpush1.msra.mxu0 %v50
      %1498 = vmatprep.subr.mxu0 0.0
      %1499 = vmatpush1.msra.mxu0 %v49
      %1500 = vmatprep.subr.mxu0 0.0
      %1501 = vmatpush1.msra.mxu0 %v48
      %1502 = vmatprep.subr.mxu0 0.0
      %1503 = vmatpush2.msra.mxu0 0.0
      %1504 = vmatprep.subr.mxu0 0.0
      %1505 = vmatpush2.msra.mxu0 0.0
      %1506 = vmatprep.subr.mxu0 0.0
      %1507 = vmatpush2.msra.mxu0 0.0
      %1508 = vmatprep.subr.mxu0 0.0
      %1509 = vmatpush2.msra.mxu0 0.0
      %1510 = vmatprep.subr.mxu0 0.0
      %1511 = vmatpush2.msra.mxu0 0.0
      %1512 = vmatprep.subr.mxu0 0.0
      %1513 = vmatpush2.msra.mxu0 0.0
      %1514 = vmatprep.subr.mxu0 0.0
      %1515 = vmatpush2.msra.mxu0 0.0
      %1516 = vmatprep.subr.mxu0 0.0
      %1517 = vmatpush2.msra.mxu0 0.0
      %1518 = vmatprep.subr.mxu0 0.0
      %1519 = vmatpush2.msra.mxu0 0.0
      %1520 = vmatprep.subr.mxu0 0.0
      %1521 = vmatpush2.msra.mxu0 0.0
      %1522 = vmatprep.subr.mxu0 0.0
      %1523 = vmatpush2.msra.mxu0 0.0
      %1524 = vmatprep.subr.mxu0 0.0
      %1525 = vmatpush2.msra.mxu0 0.0
      %1526 = vmatprep.subr.mxu0 0.0
      %1527 = vmatpush2.msra.mxu0 0.0
      %1528 = vmatprep.subr.mxu0 0.0
      %1529 = vmatpush2.msra.mxu0 0.0
      %1530 = vmatprep.subr.mxu0 0.0
      %1531 = vmatpush2.msra.mxu0 0.0
      %1532 = vmatprep.subr.mxu0 0.0
      %1533 = vmatpush2.msra.mxu0 0.0
      %1534 = vmatprep.mubr.f32.mxu0 0.0
      %1535 = vmatmul.mubr.f32.gmra.mxu0 %v1468
      %v1536 = vpop.f32.mrf.mxu0
      %v1537 = vadd.f32 0.0, %v1536
      %v1538 = vpop.f32.mrf.mxu0
      %1539 = vdwg.mxu0
      %v1541 = vrot.slane %v1537, 5
      %v1543 = vadd.f32 %v123, %v1541
      %v1545 = vsel %vm126, %v1146, 0
      %1547 = vmatprep.subr.mxu0 0.0
      %1548 = vmatpush1.msra.mxu0 0.0
      %1549 = vmatprep.subr.mxu0 0.0
      %1550 = vmatpush1.msra.mxu0 0.0
      %1551 = vmatprep.subr.mxu0 0.0
      %1552 = vmatpush1.msra.mxu0 0.0
      %1553 = vmatprep.subr.mxu0 0.0
      %1554 = vmatpush1.msra.mxu0 0.0
      %1555 = vmatprep.subr.mxu0 0.0
      %1556 = vmatpush1.msra.mxu0 0.0
      %1557 = vmatprep.subr.mxu0 0.0
      %1558 = vmatpush1.msra.mxu0 0.0
      %1559 = vmatprep.subr.mxu0 0.0
      %1560 = vmatpush1.msra.mxu0 0.0
      %1561 = vmatprep.subr.mxu0 0.0
      %1562 = vmatpush1.msra.mxu0 0.0
      %1563 = vmatprep.subr.mxu0 0.0
      %1564 = vmatpush1.msra.mxu0 0.0
      %1565 = vmatprep.subr.mxu0 0.0
      %1566 = vmatpush1.msra.mxu0 0.0
      %1567 = vmatprep.subr.mxu0 0.0
      %1568 = vmatpush1.msra.mxu0 0.0
      %1569 = vmatprep.subr.mxu0 0.0
      %1570 = vmatpush1.msra.mxu0 0.0
      %1571 = vmatprep.subr.mxu0 0.0
      %1572 = vmatpush1.msra.mxu0 %v65
      %1573 = vmatprep.subr.mxu0 0.0
      %1574 = vmatpush1.msra.mxu0 %v64
      %1575 = vmatprep.subr.mxu0 0.0
      %1576 = vmatpush1.msra.mxu0 %v63
      %1577 = vmatprep.subr.mxu0 0.0
      %1578 = vmatpush1.msra.mxu0 %v62
      %1579 = vmatprep.subr.mxu0 0.0
      %1580 = vmatpush2.msra.mxu0 0.0
      %1581 = vmatprep.subr.mxu0 0.0
      %1582 = vmatpush2.msra.mxu0 0.0
      %1583 = vmatprep.subr.mxu0 0.0
      %1584 = vmatpush2.msra.mxu0 0.0
      %1585 = vmatprep.subr.mxu0 0.0
      %1586 = vmatpush2.msra.mxu0 0.0
      %1587 = vmatprep.subr.mxu0 0.0
      %1588 = vmatpush2.msra.mxu0 0.0
      %1589 = vmatprep.subr.mxu0 0.0
      %1590 = vmatpush2.msra.mxu0 0.0
      %1591 = vmatprep.subr.mxu0 0.0
      %1592 = vmatpush2.msra.mxu0 0.0
      %1593 = vmatprep.subr.mxu0 0.0
      %1594 = vmatpush2.msra.mxu0 0.0
      %1595 = vmatprep.subr.mxu0 0.0
      %1596 = vmatpush2.msra.mxu0 0.0
      %1597 = vmatprep.subr.mxu0 0.0
      %1598 = vmatpush2.msra.mxu0 0.0
      %1599 = vmatprep.subr.mxu0 0.0
      %1600 = vmatpush2.msra.mxu0 0.0
      %1601 = vmatprep.subr.mxu0 0.0
      %1602 = vmatpush2.msra.mxu0 0.0
      %1603 = vmatprep.subr.mxu0 0.0
      %1604 = vmatpush2.msra.mxu0 0.0
      %1605 = vmatprep.subr.mxu0 0.0
      %1606 = vmatpush2.msra.mxu0 0.0
      %1607 = vmatprep.subr.mxu0 0.0
      %1608 = vmatpush2.msra.mxu0 0.0
      %1609 = vmatprep.subr.mxu0 0.0
      %1610 = vmatpush2.msra.mxu0 0.0
      %1611 = vmatprep.mubr.f32.mxu0 0.0
      %1612 = vmatmul.mubr.f32.gmra.mxu0 %v1545
      %v1613 = vpop.f32.mrf.mxu0
      %v1614 = vadd.f32 0.0, %v1613
      %v1615 = vpop.f32.mrf.mxu0
      %1616 = vdwg.mxu0
      %v1618 = vsel %vm126, %v1375, 0
      %1620 = vmatprep.subr.mxu0 0.0
      %1621 = vmatpush1.msra.mxu0 0.0
      %1622 = vmatprep.subr.mxu0 0.0
      %1623 = vmatpush1.msra.mxu0 0.0
      %1624 = vmatprep.subr.mxu0 0.0
      %1625 = vmatpush1.msra.mxu0 0.0
      %1626 = vmatprep.subr.mxu0 0.0
      %1627 = vmatpush1.msra.mxu0 0.0
      %1628 = vmatprep.subr.mxu0 0.0
      %1629 = vmatpush1.msra.mxu0 0.0
      %1630 = vmatprep.subr.mxu0 0.0
      %1631 = vmatpush1.msra.mxu0 0.0
      %1632 = vmatprep.subr.mxu0 0.0
      %1633 = vmatpush1.msra.mxu0 0.0
      %1634 = vmatprep.subr.mxu0 0.0
      %1635 = vmatpush1.msra.mxu0 0.0
      %1636 = vmatprep.subr.mxu0 0.0
      %1637 = vmatpush1.msra.mxu0 0.0
      %1638 = vmatprep.subr.mxu0 0.0
      %1639 = vmatpush1.msra.mxu0 0.0
      %1640 = vmatprep.subr.mxu0 0.0
      %1641 = vmatpush1.msra.mxu0 0.0
      %1642 = vmatprep.subr.mxu0 0.0
      %1643 = vmatpush1.msra.mxu0 0.0
      %1644 = vmatprep.subr.mxu0 0.0
      %1645 = vmatpush1.msra.mxu0 %v89
      %1646 = vmatprep.subr.mxu0 0.0
      %1647 = vmatpush1.msra.mxu0 %v88
      %1648 = vmatprep.subr.mxu0 0.0
      %1649 = vmatpush1.msra.mxu0 %v87
      %1650 = vmatprep.subr.mxu0 0.0
      %1651 = vmatpush1.msra.mxu0 %v86
      %1652 = vmatprep.subr.mxu0 0.0
      %1653 = vmatpush2.msra.mxu0 0.0
      %1654 = vmatprep.subr.mxu0 0.0
      %1655 = vmatpush2.msra.mxu0 0.0
      %1656 = vmatprep.subr.mxu0 0.0
      %1657 = vmatpush2.msra.mxu0 0.0
      %1658 = vmatprep.subr.mxu0 0.0
      %1659 = vmatpush2.msra.mxu0 0.0
      %1660 = vmatprep.subr.mxu0 0.0
      %1661 = vmatpush2.msra.mxu0 0.0
      %1662 = vmatprep.subr.mxu0 0.0
      %1663 = vmatpush2.msra.mxu0 0.0
      %1664 = vmatprep.subr.mxu0 0.0
      %1665 = vmatpush2.msra.mxu0 0.0
      %1666 = vmatprep.subr.mxu0 0.0
      %1667 = vmatpush2.msra.mxu0 0.0
      %1668 = vmatprep.subr.mxu0 0.0
      %1669 = vmatpush2.msra.mxu0 0.0
      %1670 = vmatprep.subr.mxu0 0.0
      %1671 = vmatpush2.msra.mxu0 0.0
      %1672 = vmatprep.subr.mxu0 0.0
      %1673 = vmatpush2.msra.mxu0 0.0
      %1674 = vmatprep.subr.mxu0 0.0
      %1675 = vmatpush2.msra.mxu0 0.0
      %1676 = vmatprep.subr.mxu0 0.0
      %1677 = vmatpush2.msra.mxu0 0.0
      %1678 = vmatprep.subr.mxu0 0.0
      %1679 = vmatpush2.msra.mxu0 0.0
      %1680 = vmatprep.subr.mxu0 0.0
      %1681 = vmatpush2.msra.mxu0 0.0
      %1682 = vmatprep.subr.mxu0 0.0
      %1683 = vmatpush2.msra.mxu0 0.0
      %1684 = vmatprep.mubr.f32.mxu0 0.0
      %1685 = vmatmul.mubr.f32.gmra.mxu0 %v1618
      %v1686 = vpop.f32.mrf.mxu0
      %v1687 = vadd.f32 0.0, %v1686
      %v1688 = vpop.f32.mrf.mxu0
      %1689 = vdwg.mxu0
      %v1690 = vadd.f32 %v1614, %v1687
      %v1691 = vadd.f32 %v1690, %v106
      %v1692 = vxor.u32 %v1691, 2147483648
      %v1693 = vmul.f32 %v1692, 1.442695
      %v1694 = vpow.pop %v1693
      %v1695 = vadd.f32 %v1694, 1.0
      %v1696 = vrcp.pop %v1695
      %v1697 = vmul.f32 1.0, %v1696
      %1699 = vrot.lane.b32.xlu0 %v1465, 96
      %v1700 = vpop.permute.xlu0 %1699
      %v1701 = vsel %vm126, %v1700, 0
      %1703 = vmatprep.subr.mxu0 0.0
      %1704 = vmatpush1.msra.mxu0 0.0
      %1705 = vmatprep.subr.mxu0 0.0
      %1706 = vmatpush1.msra.mxu0 0.0
      %1707 = vmatprep.subr.mxu0 0.0
      %1708 = vmatpush1.msra.mxu0 0.0
      %1709 = vmatprep.subr.mxu0 0.0
      %1710 = vmatpush1.msra.mxu0 0.0
      %1711 = vmatprep.subr.mxu0 0.0
      %1712 = vmatpush1.msra.mxu0 0.0
      %1713 = vmatprep.subr.mxu0 0.0
      %1714 = vmatpush1.msra.mxu0 0.0
      %1715 = vmatprep.subr.mxu0 0.0
      %1716 = vmatpush1.msra.mxu0 0.0
      %1717 = vmatprep.subr.mxu0 0.0
      %1718 = vmatpush1.msra.mxu0 0.0
      %1719 = vmatprep.subr.mxu0 0.0
      %1720 = vmatpush1.msra.mxu0 0.0
      %1721 = vmatprep.subr.mxu0 0.0
      %1722 = vmatpush1.msra.mxu0 0.0
      %1723 = vmatprep.subr.mxu0 0.0
      %1724 = vmatpush1.msra.mxu0 0.0
      %1725 = vmatprep.subr.mxu0 0.0
      %1726 = vmatpush1.msra.mxu0 0.0
      %1727 = vmatprep.subr.mxu0 0.0
      %1728 = vmatpush1.msra.mxu0 %v94
      %1729 = vmatprep.subr.mxu0 0.0
      %1730 = vmatpush1.msra.mxu0 %v93
      %1731 = vmatprep.subr.mxu0 0.0
      %1732 = vmatpush1.msra.mxu0 %v92
      %1733 = vmatprep.subr.mxu0 0.0
      %1734 = vmatpush1.msra.mxu0 %v91
      %1735 = vmatprep.subr.mxu0 0.0
      %1736 = vmatpush2.msra.mxu0 0.0
      %1737 = vmatprep.subr.mxu0 0.0
      %1738 = vmatpush2.msra.mxu0 0.0
      %1739 = vmatprep.subr.mxu0 0.0
      %1740 = vmatpush2.msra.mxu0 0.0
      %1741 = vmatprep.subr.mxu0 0.0
      %1742 = vmatpush2.msra.mxu0 0.0
      %1743 = vmatprep.subr.mxu0 0.0
      %1744 = vmatpush2.msra.mxu0 0.0
      %1745 = vmatprep.subr.mxu0 0.0
      %1746 = vmatpush2.msra.mxu0 0.0
      %1747 = vmatprep.subr.mxu0 0.0
      %1748 = vmatpush2.msra.mxu0 0.0
      %1749 = vmatprep.subr.mxu0 0.0
      %1750 = vmatpush2.msra.mxu0 0.0
      %1751 = vmatprep.subr.mxu0 0.0
      %1752 = vmatpush2.msra.mxu0 0.0
      %1753 = vmatprep.subr.mxu0 0.0
      %1754 = vmatpush2.msra.mxu0 0.0
      %1755 = vmatprep.subr.mxu0 0.0
      %1756 = vmatpush2.msra.mxu0 0.0
      %1757 = vmatprep.subr.mxu0 0.0
      %1758 = vmatpush2.msra.mxu0 0.0
      %1759 = vmatprep.subr.mxu0 0.0
      %1760 = vmatpush2.msra.mxu0 0.0
      %1761 = vmatprep.subr.mxu0 0.0
      %1762 = vmatpush2.msra.mxu0 0.0
      %1763 = vmatprep.subr.mxu0 0.0
      %1764 = vmatpush2.msra.mxu0 0.0
      %1765 = vmatprep.subr.mxu0 0.0
      %1766 = vmatpush2.msra.mxu0 0.0
      %1767 = vmatprep.mubr.f32.mxu0 0.0
      %1768 = vmatmul.mubr.f32.gmra.mxu0 %v1701
      %v1769 = vpop.f32.mrf.mxu0
      %v1770 = vadd.f32 0.0, %v1769
      %v1771 = vpop.f32.mrf.mxu0
      %1772 = vdwg.mxu0
      %1774 = vrot.lane.b32.xlu0 %v1770, 32
      %v1775 = vpop.permute.xlu0 %1774
      %v1777 = vadd.f32 %v1614, %v1775
      %v1778 = vadd.f32 %v1777, %v1457
      %v1779 = vxor.u32 %v1778, 2147483648
      %v1780 = vmul.f32 %v1779, 1.442695
      %v1781 = vpow.pop %v1780
      %v1782 = vadd.f32 %v1781, 1.0
      %v1783 = vrcp.pop %v1782
      %v1784 = vmul.f32 1.0, %v1783
      %v1785 = vrot.slane %v824, 7
      %v1787 = vrot.slane %v1465, 6
      %1788 = vrot.lane.b32.xlu0 %v1787, 96
      %v1789 = vpop.permute.xlu0 %1788
      %v1791 = vrot.slane %v1146, 5
      %vm1793 = vcmask 1040384
      %v1794 = vsel %vm1793, %v199, %v1785
      %vm1795 = vcmask 1041408
      %v1796 = vsel %vm1795, %v1794, %v1789
      %vm1797 = vcmask 1042432
      %v1798 = vsel %vm1797, %v1796, %v1791
      %s1799 = scalar_lea.vmem %s5, %s121
      %vm1800 = vcmask 257024
      %1801 = vst.msk [vmem:[%s1799] sm:$0xf] %vm1800, %v1798
    $region34: #{mtm_forward_pallas.1} parent=1 // loop_footer
      %s116 = sadd.s32 1, %s112
    $region35: #{mtm_forward_pallas.1} parent=1 // loop_footer_branch
      %111 = sbr.rel target = $region31
    $region36: #{mtm_forward_pallas.1} parent=1 // loop_exit
      _
    // Predicated region
    $region37: #{mtm_forward_pallas.1} parent=1 // pred_check
      _
    $region38: #{mtm_forward_pallas.1} parent=1 // pred_check_branch
      %1803 = sbr.rel (0) target = $region40
    $region39: #{mtm_forward_pallas.1} parent=1 // pred_region
      _
    $region40: #{mtm_forward_pallas.1} parent=1 // pred_fallthru
      _
    // Predicated region
    $region41: #{mtm_forward_pallas.1} parent=1 // pred_check
      _
    $region42: #{mtm_forward_pallas.1} parent=1 // pred_check_branch
      %1805 = sbr.rel (0) target = $region44
    $region43: #{mtm_forward_pallas.1} parent=1 // pred_region
      _
    $region44: #{mtm_forward_pallas.1} parent=1 // pred_fallthru
      _
    %1806 = vsyncpa [#allocation3], 1
    %1807 = vsyncpa [#allocation5], 1

</llo_original>
